<compile_context>
chip_gen: v5e
topology: v5e:2x2
jax: 0.10.0
libtpu: 0.0.40
codegen_flags: <defaults>
</compile_context>

<pallas_src>
import functools
import math

import jax
import jax.numpy as jnp
from jax import lax
from jax.experimental import pallas as pl
from jax.experimental.pallas import tpu as pltpu


def _encoder_kernel(xpe_ref, w_ref, b_ref, o_ref, *, num_heads, num_layers,
                    batch, seq):
    """Whole encoder stack, all batch elements, single invocation.

    xpe_ref : (2, B*S, C) f32   [x ; pos_embed], batch-major rows (row = b*S + s)
    w_ref   : (L, 5, C, C) bf16 [Wq', Wk', Wv', Wout, Wffn']  (y = x @ W layout)
    b_ref   : (L, 4, 1, C) f32  [b_q, b_k, b_v, b_out]
    o_ref   : (B*S, C) f32      output rows, same layout as the input rows
    """
    H = num_heads
    C = xpe_ref.shape[2]
    D = C // H
    S = seq
    scale = 1.0 / math.sqrt(D)
    f32 = jnp.float32
    bf16 = jnp.bfloat16

    x = xpe_ref[0]                                    # (B*S, C) f32
    pe = xpe_ref[1]                                   # (B*S, C) f32

    for l in range(num_layers):                       # static unroll (L small)
        xe = x + pe
        # Folded (outer qkv Linear ∘ MHA in_proj) projections: bf16 MXU, f32 acc.
        q = jnp.dot(x.astype(bf16), w_ref[l, 0],
                    preferred_element_type=f32) + b_ref[l, 0]
        k = jnp.dot(xe.astype(bf16), w_ref[l, 1],
                    preferred_element_type=f32) + b_ref[l, 1]
        v = jnp.dot(xe.astype(bf16), w_ref[l, 2],
                    preferred_element_type=f32) + b_ref[l, 2]

        # Per-(batch, head) attention on tiny (S, D) blocks (static slices of
        # values; f32 operands — see header note).
        rows = []
        for b in range(batch):
            rs = slice(b * S, (b + 1) * S)
            heads = []
            for h in range(H):
                cs = slice(h * D, (h + 1) * D)
                qh = q[rs, cs]                        # (S, D)
                kh = k[rs, cs]
                vh = v[rs, cs]
                # scores = qh @ kh.T  (contract last dims; no explicit transpose)
                s = lax.dot_general(qh, kh, (((1,), (1,)), ((), ())),
                                    preferred_element_type=f32) * scale
                s = s - jnp.max(s, axis=-1, keepdims=True)
                e = jnp.exp(s)
                p = e * pl.reciprocal(jnp.sum(e, axis=-1, keepdims=True),
                                      approx=True)
                heads.append(jnp.dot(p, vh, preferred_element_type=f32))
            rows.append(jnp.concatenate(heads, axis=1))    # (S, C)
        attn = jnp.concatenate(rows, axis=0)               # (B*S, C) f32

        # Head-concat + out_proj fused into ONE dense matmul, then residual,
        # then the folded fc1∘fc2 matmul + residual.
        attn = jnp.dot(attn.astype(bf16), w_ref[l, 3],
                       preferred_element_type=f32) + b_ref[l, 3]
        x = attn + x
        x = jnp.dot(x.astype(bf16), w_ref[l, 4],
                    preferred_element_type=f32) + x

    o_ref[...] = x.astype(o_ref.dtype)


def fold_encoder_params(w_qkv, w_in, b_in, w_out, b_out, w_fc):
    """Exact host-side folds of the chained bias-free linear pairs.

    Inputs (all stored transposed, y = x @ W, stacked over layers):
      w_qkv : (L, 3, C, C)  outer q/k/v Linear weights
      w_in  : (L, 3, C, C)  MHA in_proj weights split q/k/v
      b_in  : (L, 3, 1, C)  MHA in_proj biases
      w_out : (L, C, C)     MHA out_proj weight
      b_out : (L, 1, C)     MHA out_proj bias
      w_fc  : (L, 2, C, C)  fc1 / fc2 weights
    Returns:
      w_all : (L, 5, C, C) bf16  [Wq@Win_q, Wk@Win_k, Wv@Win_v, Wout, Wfc1@Wfc2]
      b_all : (L, 4, 1, C) f32   [b_q, b_k, b_v, b_out]
    """
    hi = lax.Precision.HIGHEST
    mm = functools.partial(jnp.einsum, 'lij,ljk->lik', precision=hi)
    wq = mm(w_qkv[:, 0], w_in[:, 0])
    wk = mm(w_qkv[:, 1], w_in[:, 1])
    wv = mm(w_qkv[:, 2], w_in[:, 2])
    wffn = mm(w_fc[:, 0], w_fc[:, 1])
    w_all = jnp.stack([wq, wk, wv, w_out, wffn], axis=1).astype(jnp.bfloat16)
    b_all = jnp.concatenate([b_in, b_out[:, None]], axis=1).astype(jnp.float32)
    return w_all, b_all


def transformer_encoder_pallas(x_sbc, pe_sbc, w_all, b_all, *, num_heads):
    """x_sbc, pe_sbc: (S, B, C) seq-first (PyTorch MHA layout) -> (B, S, C)."""
    S, B, C = x_sbc.shape
    L = w_all.shape[0]

    # Batch-major rows so the kernel runs dense matmuls on all B*S rows at once
    # while attention uses static per-batch row slices.  Stack x / pe into one
    # input stream (single DMA).
    x_rows = jnp.transpose(x_sbc, (1, 0, 2)).reshape(B * S, C)
    pe_rows = jnp.transpose(pe_sbc, (1, 0, 2)).reshape(B * S, C)
    xpe = jnp.stack([x_rows, pe_rows], axis=0)               # (2, B*S, C)

    vmem = pltpu.MemorySpace.VMEM
    out_rows = pl.pallas_call(
        functools.partial(_encoder_kernel, num_heads=num_heads, num_layers=L,
                          batch=B, seq=S),
        out_shape=jax.ShapeDtypeStruct((B * S, C), x_sbc.dtype),
        in_specs=[pl.BlockSpec(memory_space=vmem)] * 3,      # whole arrays in VMEM
        out_specs=pl.BlockSpec(memory_space=vmem),
    )(xpe, w_all, b_all)
    return out_rows.reshape(B, S, C)


def _organize_shape_sbc(x_sb):
    # PyTorch: transpose(0,1) -> transpose(1,2) -> unsqueeze(2): (S,B,*) -> (B,*,1,S)
    return jnp.transpose(x_sb, (1, 2, 0))[:, :, None, :]


def _organize_shape_bsc(x_bs):
    # Same result, starting from batch-first (B, S, *) kernel output.
    return jnp.transpose(x_bs, (0, 2, 1))[:, :, None, :]


def transformer_encoder_forward(x, pos, pos_embed, folded_params, *, num_heads):
    """Mirrors TransformerEncoder.forward((x, pos, pos_embed))."""
    if pos_embed is None:
        pos_embed = jnp.zeros_like(x)   # `pos_embed is None` branch (k,v from x)
    out_bsc = transformer_encoder_pallas(x, pos_embed, *folded_params,
                                         num_heads=num_heads)
    return _organize_shape_bsc(out_bsc), _organize_shape_sbc(pos)


def _ref_encoder(x_sbc, pe_sbc, w_qkv, w_in, b_in, w_out, b_out, w_fc,
                 *, num_heads):
    """Plain-JAX f32 reference of the ORIGINAL (unfolded) module math."""
    S, B, C = x_sbc.shape
    L = w_qkv.shape[0]
    H = num_heads
    D = C // H
    scale = 1.0 / math.sqrt(D)
    hi = lax.Precision.HIGHEST
    x = x_sbc
    for l in range(L):
        xe = x + pe_sbc
        q = jnp.einsum('sbc,cd->sbd', x, w_qkv[l, 0], precision=hi)
        k = jnp.einsum('sbc,cd->sbd', xe, w_qkv[l, 1], precision=hi)
        v = jnp.einsum('sbc,cd->sbd', xe, w_qkv[l, 2], precision=hi)
        qi = jnp.einsum('sbc,cd->sbd', q, w_in[l, 0], precision=hi) + b_in[l, 0]
        ki = jnp.einsum('sbc,cd->sbd', k, w_in[l, 1], precision=hi) + b_in[l, 1]
        vi = jnp.einsum('sbc,cd->sbd', v, w_in[l, 2], precision=hi) + b_in[l, 2]
        split = lambda t: jnp.transpose(t.reshape(S, B, H, D), (1, 2, 0, 3))
        qh, kh, vh = split(qi), split(ki), split(vi)
        s = jnp.einsum('bhqd,bhkd->bhqk', qh, kh, precision=hi) * scale
        p = jax.nn.softmax(s, axis=-1)
        oh = jnp.einsum('bhqk,bhkd->bhqd', p, vh, precision=hi)
        o = jnp.transpose(oh, (2, 0, 1, 3)).reshape(S, B, C)
        attn = jnp.einsum('sbc,cd->sbd', o, w_out[l], precision=hi) + b_out[l]
        x = attn + x
        h1 = jnp.einsum('sbc,cd->sbd', x, w_fc[l, 0], precision=hi)
        x = jnp.einsum('sbc,cd->sbd', h1, w_fc[l, 1], precision=hi) + x
    return x


if __name__ == "__main__":
    # TransformerEncoder(c=32, num_heads=4, num_layers=2); seq=8, batch=2.
    S, B, C = 8, 2, 32
    H, L = 4, 2
    CP = 4   # feature dim of `pos` (only reshaped / passed through)

    key = jax.random.PRNGKey(0)
    ks = jax.random.split(key, 9)
    x = jax.random.normal(ks[0], (S, B, C), jnp.float32)
    pos = jax.random.normal(ks[1], (S, B, CP), jnp.float32)
    pos_embed = 0.1 * jax.random.normal(ks[2], (S, B, C), jnp.float32)

    # Deterministic synthetic weights, stored transposed (y = x @ W) relative to
    # PyTorch nn.Linear's (out, in) layout, stacked over layers.
    ws = 0.125
    w_qkv = ws * jax.random.normal(ks[3], (L, 3, C, C), jnp.float32)
    w_in = ws * jax.random.normal(ks[4], (L, 3, C, C), jnp.float32)
    b_in = 0.05 * jax.random.normal(ks[5], (L, 3, 1, C), jnp.float32)
    w_out = ws * jax.random.normal(ks[6], (L, C, C), jnp.float32)
    b_out = 0.05 * jax.random.normal(ks[7], (L, 1, C), jnp.float32)
    w_fc = ws * jax.random.normal(ks[8], (L, 2, C, C), jnp.float32)
    raw_params = (w_qkv, w_in, b_in, w_out, b_out, w_fc)

    folded = fold_encoder_params(*raw_params)
    out_x, out_pos = transformer_encoder_forward(x, pos, pos_embed, folded,
                                                 num_heads=H)
    jax.block_until_ready((out_x, out_pos))

    # Correctness vs plain-JAX f32 reference of the original (unfolded) math.
    # Tolerance is the expected envelope for bf16 MXU operands / bf16-quantized
    # folded weights + the approximate EUP reciprocal used in the kernel.
    ref_x = _ref_encoder(x, pos_embed, *raw_params, num_heads=H)
    assert out_x.shape == (B, C, 1, S)
    assert out_pos.shape == (B, CP, 1, S)
    assert jnp.allclose(out_x, _organize_shape_sbc(ref_x), atol=5e-2, rtol=3e-2)
    assert jnp.array_equal(out_pos, _organize_shape_sbc(pos))

    print("KERNEL_OK")
</pallas_src>

<mosaic_0001>
module attributes {stable_mosaic.version = 11 : i64} {
  func.func @_encoder_kernel(%arg0: memref<2x16x32xf32, #tpu.memory_space<vmem>>, %arg1: memref<2x5x32x32xbf16, #tpu.memory_space<vmem>>, %arg2: memref<2x4x1x32xf32, #tpu.memory_space<vmem>>, %arg3: memref<16x32xf32, #tpu.memory_space<vmem>>) attributes {dimension_semantics = [], scalar_prefetch = 0 : i64, scratch_operands = 0 : i64, tpu.core_type = #tpu.core_type<tc>} {
    %c0 = arith.constant 0 : index
    %c0_0 = arith.constant 0 : index
    %c0_1 = arith.constant 0 : index
    %0 = vector.load %arg0[%c0, %c0_0, %c0_1] : memref<2x16x32xf32, #tpu.memory_space<vmem>>, vector<1x16x32xf32>
    %1 = vector.shape_cast %0 : vector<1x16x32xf32> to vector<16x32xf32>
    %c1 = arith.constant 1 : index
    %c0_2 = arith.constant 0 : index
    %c0_3 = arith.constant 0 : index
    %2 = vector.load %arg0[%c1, %c0_2, %c0_3] : memref<2x16x32xf32, #tpu.memory_space<vmem>>, vector<1x16x32xf32>
    %3 = vector.shape_cast %2 : vector<1x16x32xf32> to vector<16x32xf32>
    %4 = arith.addf %1, %3 : vector<16x32xf32>
    %5 = arith.truncf %1 : vector<16x32xf32> to vector<16x32xbf16>
    %c0_4 = arith.constant 0 : index
    %c0_5 = arith.constant 0 : index
    %c0_6 = arith.constant 0 : index
    %c0_7 = arith.constant 0 : index
    %6 = vector.load %arg1[%c0_4, %c0_5, %c0_6, %c0_7] : memref<2x5x32x32xbf16, #tpu.memory_space<vmem>>, vector<1x1x32x32xbf16>
    %7 = vector.shape_cast %6 : vector<1x1x32x32xbf16> to vector<32x32xbf16>
    %cst = arith.constant dense<0.000000e+00> : vector<16x32xf32>
    %8 = tpu.matmul %5, %7, %cst {dimension_numbers = #tpu.dot_dimension_numbers<[1], [0], [0], [1], [0, 0, 1, 1], [], []>} : vector<16x32xbf16>, vector<32x32xbf16>, vector<16x32xf32> -> vector<16x32xf32>
    %c0_8 = arith.constant 0 : index
    %c0_9 = arith.constant 0 : index
    %c0_10 = arith.constant 0 : index
    %c0_11 = arith.constant 0 : index
    %9 = vector.load %arg2[%c0_8, %c0_9, %c0_10, %c0_11] : memref<2x4x1x32xf32, #tpu.memory_space<vmem>>, vector<1x1x1x32xf32>
    %10 = vector.shape_cast %9 : vector<1x1x1x32xf32> to vector<1x32xf32>
    %11 = vector.broadcast %10 : vector<1x32xf32> to vector<16x32xf32>
    %12 = arith.addf %8, %11 : vector<16x32xf32>
    %13 = arith.truncf %4 : vector<16x32xf32> to vector<16x32xbf16>
    %c0_12 = arith.constant 0 : index
    %c1_13 = arith.constant 1 : index
    %c0_14 = arith.constant 0 : index
    %c0_15 = arith.constant 0 : index
    %14 = vector.load %arg1[%c0_12, %c1_13, %c0_14, %c0_15] : memref<2x5x32x32xbf16, #tpu.memory_space<vmem>>, vector<1x1x32x32xbf16>
    %15 = vector.shape_cast %14 : vector<1x1x32x32xbf16> to vector<32x32xbf16>
    %cst_16 = arith.constant dense<0.000000e+00> : vector<16x32xf32>
    %16 = tpu.matmul %13, %15, %cst_16 {dimension_numbers = #tpu.dot_dimension_numbers<[1], [0], [0], [1], [0, 0, 1, 1], [], []>} : vector<16x32xbf16>, vector<32x32xbf16>, vector<16x32xf32> -> vector<16x32xf32>
    %c0_17 = arith.constant 0 : index
    %c1_18 = arith.constant 1 : index
    %c0_19 = arith.constant 0 : index
    %c0_20 = arith.constant 0 : index
    %17 = vector.load %arg2[%c0_17, %c1_18, %c0_19, %c0_20] : memref<2x4x1x32xf32, #tpu.memory_space<vmem>>, vector<1x1x1x32xf32>
    %18 = vector.shape_cast %17 : vector<1x1x1x32xf32> to vector<1x32xf32>
    %19 = vector.broadcast %18 : vector<1x32xf32> to vector<16x32xf32>
    %20 = arith.addf %16, %19 : vector<16x32xf32>
    %21 = arith.truncf %4 : vector<16x32xf32> to vector<16x32xbf16>
    %c0_21 = arith.constant 0 : index
    %c2 = arith.constant 2 : index
    %c0_22 = arith.constant 0 : index
    %c0_23 = arith.constant 0 : index
    %22 = vector.load %arg1[%c0_21, %c2, %c0_22, %c0_23] : memref<2x5x32x32xbf16, #tpu.memory_space<vmem>>, vector<1x1x32x32xbf16>
    %23 = vector.shape_cast %22 : vector<1x1x32x32xbf16> to vector<32x32xbf16>
    %cst_24 = arith.constant dense<0.000000e+00> : vector<16x32xf32>
    %24 = tpu.matmul %21, %23, %cst_24 {dimension_numbers = #tpu.dot_dimension_numbers<[1], [0], [0], [1], [0, 0, 1, 1], [], []>} : vector<16x32xbf16>, vector<32x32xbf16>, vector<16x32xf32> -> vector<16x32xf32>
    %c0_25 = arith.constant 0 : index
    %c2_26 = arith.constant 2 : index
    %c0_27 = arith.constant 0 : index
    %c0_28 = arith.constant 0 : index
    %25 = vector.load %arg2[%c0_25, %c2_26, %c0_27, %c0_28] : memref<2x4x1x32xf32, #tpu.memory_space<vmem>>, vector<1x1x1x32xf32>
    %26 = vector.shape_cast %25 : vector<1x1x1x32xf32> to vector<1x32xf32>
    %27 = vector.broadcast %26 : vector<1x32xf32> to vector<16x32xf32>
    %28 = arith.addf %24, %27 : vector<16x32xf32>
    %29 = vector.extract_strided_slice %12 {offsets = [0, 0], sizes = [8, 8], strides = [1, 1]} : vector<16x32xf32> to vector<8x8xf32>
    %30 = vector.extract_strided_slice %20 {offsets = [0, 0], sizes = [8, 8], strides = [1, 1]} : vector<16x32xf32> to vector<8x8xf32>
    %31 = vector.extract_strided_slice %28 {offsets = [0, 0], sizes = [8, 8], strides = [1, 1]} : vector<16x32xf32> to vector<8x8xf32>
    %cst_29 = arith.constant dense<0.000000e+00> : vector<8x8xf32>
    %32 = tpu.matmul %29, %30, %cst_29 {dimension_numbers = #tpu.dot_dimension_numbers<[1], [1], [0], [0], [0, 0, 1, 0], [], []>} : vector<8x8xf32>, vector<8x8xf32>, vector<8x8xf32> -> vector<8x8xf32>
    %cst_30 = arith.constant 0.353553385 : f32
    %33 = vector.broadcast %cst_30 : f32 to vector<8x8xf32>
    %34 = arith.mulf %32, %33 : vector<8x8xf32>
    %cst_31 = arith.constant dense<0xFF800000> : vector<8xf32>
    %35 = vector.multi_reduction <maximumf>, %34, %cst_31 [1] : vector<8x8xf32> to vector<8xf32>
    %36 = vector.shape_cast %35 : vector<8xf32> to vector<8x1xf32>
    %37 = vector.broadcast %36 : vector<8x1xf32> to vector<8x8xf32>
    %38 = arith.subf %34, %37 : vector<8x8xf32>
    %39 = math.exp %38 : vector<8x8xf32>
    %cst_32 = arith.constant dense<0.000000e+00> : vector<8xf32>
    %40 = vector.multi_reduction <add>, %39, %cst_32 [1] : vector<8x8xf32> to vector<8xf32>
    %41 = vector.shape_cast %40 : vector<8xf32> to vector<8x1xf32>
    %42 = tpu.reciprocal %41 {approx = true} : vector<8x1xf32> -> vector<8x1xf32>
    %43 = vector.broadcast %42 : vector<8x1xf32> to vector<8x8xf32>
    %44 = arith.mulf %39, %43 : vector<8x8xf32>
    %cst_33 = arith.constant dense<0.000000e+00> : vector<8x8xf32>
    %45 = tpu.matmul %44, %31, %cst_33 {dimension_numbers = #tpu.dot_dimension_numbers<[1], [0], [0], [1], [0, 0, 1, 1], [], []>} : vector<8x8xf32>, vector<8x8xf32>, vector<8x8xf32> -> vector<8x8xf32>
    %46 = vector.extract_strided_slice %12 {offsets = [0, 8], sizes = [8, 8], strides = [1, 1]} : vector<16x32xf32> to vector<8x8xf32>
    %47 = vector.extract_strided_slice %20 {offsets = [0, 8], sizes = [8, 8], strides = [1, 1]} : vector<16x32xf32> to vector<8x8xf32>
    %48 = vector.extract_strided_slice %28 {offsets = [0, 8], sizes = [8, 8], strides = [1, 1]} : vector<16x32xf32> to vector<8x8xf32>
    %cst_34 = arith.constant dense<0.000000e+00> : vector<8x8xf32>
    %49 = tpu.matmul %46, %47, %cst_34 {dimension_numbers = #tpu.dot_dimension_numbers<[1], [1], [0], [0], [0, 0, 1, 0], [], []>} : vector<8x8xf32>, vector<8x8xf32>, vector<8x8xf32> -> vector<8x8xf32>
    %cst_35 = arith.constant 0.353553385 : f32
    %50 = vector.broadcast %cst_35 : f32 to vector<8x8xf32>
    %51 = arith.mulf %49, %50 : vector<8x8xf32>
    %cst_36 = arith.constant dense<0xFF800000> : vector<8xf32>
    %52 = vector.multi_reduction <maximumf>, %51, %cst_36 [1] : vector<8x8xf32> to vector<8xf32>
    %53 = vector.shape_cast %52 : vector<8xf32> to vector<8x1xf32>
    %54 = vector.broadcast %53 : vector<8x1xf32> to vector<8x8xf32>
    %55 = arith.subf %51, %54 : vector<8x8xf32>
    %56 = math.exp %55 : vector<8x8xf32>
    %cst_37 = arith.constant dense<0.000000e+00> : vector<8xf32>
    %57 = vector.multi_reduction <add>, %56, %cst_37 [1] : vector<8x8xf32> to vector<8xf32>
    %58 = vector.shape_cast %57 : vector<8xf32> to vector<8x1xf32>
    %59 = tpu.reciprocal %58 {approx = true} : vector<8x1xf32> -> vector<8x1xf32>
    %60 = vector.broadcast %59 : vector<8x1xf32> to vector<8x8xf32>
    %61 = arith.mulf %56, %60 : vector<8x8xf32>
    %cst_38 = arith.constant dense<0.000000e+00> : vector<8x8xf32>
    %62 = tpu.matmul %61, %48, %cst_38 {dimension_numbers = #tpu.dot_dimension_numbers<[1], [0], [0], [1], [0, 0, 1, 1], [], []>} : vector<8x8xf32>, vector<8x8xf32>, vector<8x8xf32> -> vector<8x8xf32>
    %63 = vector.extract_strided_slice %12 {offsets = [0, 16], sizes = [8, 8], strides = [1, 1]} : vector<16x32xf32> to vector<8x8xf32>
    %64 = vector.extract_strided_slice %20 {offsets = [0, 16], sizes = [8, 8], strides = [1, 1]} : vector<16x32xf32> to vector<8x8xf32>
    %65 = vector.extract_strided_slice %28 {offsets = [0, 16], sizes = [8, 8], strides = [1, 1]} : vector<16x32xf32> to vector<8x8xf32>
    %cst_39 = arith.constant dense<0.000000e+00> : vector<8x8xf32>
    %66 = tpu.matmul %63, %64, %cst_39 {dimension_numbers = #tpu.dot_dimension_numbers<[1], [1], [0], [0], [0, 0, 1, 0], [], []>} : vector<8x8xf32>, vector<8x8xf32>, vector<8x8xf32> -> vector<8x8xf32>
    %cst_40 = arith.constant 0.353553385 : f32
    %67 = vector.broadcast %cst_40 : f32 to vector<8x8xf32>
    %68 = arith.mulf %66, %67 : vector<8x8xf32>
    %cst_41 = arith.constant dense<0xFF800000> : vector<8xf32>
    %69 = vector.multi_reduction <maximumf>, %68, %cst_41 [1] : vector<8x8xf32> to vector<8xf32>
    %70 = vector.shape_cast %69 : vector<8xf32> to vector<8x1xf32>
    %71 = vector.broadcast %70 : vector<8x1xf32> to vector<8x8xf32>
    %72 = arith.subf %68, %71 : vector<8x8xf32>
    %73 = math.exp %72 : vector<8x8xf32>
    %cst_42 = arith.constant dense<0.000000e+00> : vector<8xf32>
    %74 = vector.multi_reduction <add>, %73, %cst_42 [1] : vector<8x8xf32> to vector<8xf32>
    %75 = vector.shape_cast %74 : vector<8xf32> to vector<8x1xf32>
    %76 = tpu.reciprocal %75 {approx = true} : vector<8x1xf32> -> vector<8x1xf32>
    %77 = vector.broadcast %76 : vector<8x1xf32> to vector<8x8xf32>
    %78 = arith.mulf %73, %77 : vector<8x8xf32>
    %cst_43 = arith.constant dense<0.000000e+00> : vector<8x8xf32>
    %79 = tpu.matmul %78, %65, %cst_43 {dimension_numbers = #tpu.dot_dimension_numbers<[1], [0], [0], [1], [0, 0, 1, 1], [], []>} : vector<8x8xf32>, vector<8x8xf32>, vector<8x8xf32> -> vector<8x8xf32>
    %80 = vector.extract_strided_slice %12 {offsets = [0, 24], sizes = [8, 8], strides = [1, 1]} : vector<16x32xf32> to vector<8x8xf32>
    %81 = vector.extract_strided_slice %20 {offsets = [0, 24], sizes = [8, 8], strides = [1, 1]} : vector<16x32xf32> to vector<8x8xf32>
    %82 = vector.extract_strided_slice %28 {offsets = [0, 24], sizes = [8, 8], strides = [1, 1]} : vector<16x32xf32> to vector<8x8xf32>
    %cst_44 = arith.constant dense<0.000000e+00> : vector<8x8xf32>
    %83 = tpu.matmul %80, %81, %cst_44 {dimension_numbers = #tpu.dot_dimension_numbers<[1], [1], [0], [0], [0, 0, 1, 0], [], []>} : vector<8x8xf32>, vector<8x8xf32>, vector<8x8xf32> -> vector<8x8xf32>
    %cst_45 = arith.constant 0.353553385 : f32
    %84 = vector.broadcast %cst_45 : f32 to vector<8x8xf32>
    %85 = arith.mulf %83, %84 : vector<8x8xf32>
    %cst_46 = arith.constant dense<0xFF800000> : vector<8xf32>
    %86 = vector.multi_reduction <maximumf>, %85, %cst_46 [1] : vector<8x8xf32> to vector<8xf32>
    %87 = vector.shape_cast %86 : vector<8xf32> to vector<8x1xf32>
    %88 = vector.broadcast %87 : vector<8x1xf32> to vector<8x8xf32>
    %89 = arith.subf %85, %88 : vector<8x8xf32>
    %90 = math.exp %89 : vector<8x8xf32>
    %cst_47 = arith.constant dense<0.000000e+00> : vector<8xf32>
    %91 = vector.multi_reduction <add>, %90, %cst_47 [1] : vector<8x8xf32> to vector<8xf32>
    %92 = vector.shape_cast %91 : vector<8xf32> to vector<8x1xf32>
    %93 = tpu.reciprocal %92 {approx = true} : vector<8x1xf32> -> vector<8x1xf32>
    %94 = vector.broadcast %93 : vector<8x1xf32> to vector<8x8xf32>
    %95 = arith.mulf %90, %94 : vector<8x8xf32>
    %cst_48 = arith.constant dense<0.000000e+00> : vector<8x8xf32>
    %96 = tpu.matmul %95, %82, %cst_48 {dimension_numbers = #tpu.dot_dimension_numbers<[1], [0], [0], [1], [0, 0, 1, 1], [], []>} : vector<8x8xf32>, vector<8x8xf32>, vector<8x8xf32> -> vector<8x8xf32>
    %97 = tpu.concatenate %45, %62, %79, %96 in 1 : vector<8x8xf32>, vector<8x8xf32>, vector<8x8xf32>, vector<8x8xf32> -> vector<8x32xf32>
    %98 = vector.extract_strided_slice %12 {offsets = [8, 0], sizes = [8, 8], strides = [1, 1]} : vector<16x32xf32> to vector<8x8xf32>
    %99 = vector.extract_strided_slice %20 {offsets = [8, 0], sizes = [8, 8], strides = [1, 1]} : vector<16x32xf32> to vector<8x8xf32>
    %100 = vector.extract_strided_slice %28 {offsets = [8, 0], sizes = [8, 8], strides = [1, 1]} : vector<16x32xf32> to vector<8x8xf32>
    %cst_49 = arith.constant dense<0.000000e+00> : vector<8x8xf32>
    %101 = tpu.matmul %98, %99, %cst_49 {dimension_numbers = #tpu.dot_dimension_numbers<[1], [1], [0], [0], [0, 0, 1, 0], [], []>} : vector<8x8xf32>, vector<8x8xf32>, vector<8x8xf32> -> vector<8x8xf32>
    %cst_50 = arith.constant 0.353553385 : f32
    %102 = vector.broadcast %cst_50 : f32 to vector<8x8xf32>
    %103 = arith.mulf %101, %102 : vector<8x8xf32>
    %cst_51 = arith.constant dense<0xFF800000> : vector<8xf32>
    %104 = vector.multi_reduction <maximumf>, %103, %cst_51 [1] : vector<8x8xf32> to vector<8xf32>
    %105 = vector.shape_cast %104 : vector<8xf32> to vector<8x1xf32>
    %106 = vector.broadcast %105 : vector<8x1xf32> to vector<8x8xf32>
    %107 = arith.subf %103, %106 : vector<8x8xf32>
    %108 = math.exp %107 : vector<8x8xf32>
    %cst_52 = arith.constant dense<0.000000e+00> : vector<8xf32>
    %109 = vector.multi_reduction <add>, %108, %cst_52 [1] : vector<8x8xf32> to vector<8xf32>
    %110 = vector.shape_cast %109 : vector<8xf32> to vector<8x1xf32>
    %111 = tpu.reciprocal %110 {approx = true} : vector<8x1xf32> -> vector<8x1xf32>
    %112 = vector.broadcast %111 : vector<8x1xf32> to vector<8x8xf32>
    %113 = arith.mulf %108, %112 : vector<8x8xf32>
    %cst_53 = arith.constant dense<0.000000e+00> : vector<8x8xf32>
    %114 = tpu.matmul %113, %100, %cst_53 {dimension_numbers = #tpu.dot_dimension_numbers<[1], [0], [0], [1], [0, 0, 1, 1], [], []>} : vector<8x8xf32>, vector<8x8xf32>, vector<8x8xf32> -> vector<8x8xf32>
    %115 = vector.extract_strided_slice %12 {offsets = [8, 8], sizes = [8, 8], strides = [1, 1]} : vector<16x32xf32> to vector<8x8xf32>
    %116 = vector.extract_strided_slice %20 {offsets = [8, 8], sizes = [8, 8], strides = [1, 1]} : vector<16x32xf32> to vector<8x8xf32>
    %117 = vector.extract_strided_slice %28 {offsets = [8, 8], sizes = [8, 8], strides = [1, 1]} : vector<16x32xf32> to vector<8x8xf32>
    %cst_54 = arith.constant dense<0.000000e+00> : vector<8x8xf32>
    %118 = tpu.matmul %115, %116, %cst_54 {dimension_numbers = #tpu.dot_dimension_numbers<[1], [1], [0], [0], [0, 0, 1, 0], [], []>} : vector<8x8xf32>, vector<8x8xf32>, vector<8x8xf32> -> vector<8x8xf32>
    %cst_55 = arith.constant 0.353553385 : f32
    %119 = vector.broadcast %cst_55 : f32 to vector<8x8xf32>
    %120 = arith.mulf %118, %119 : vector<8x8xf32>
    %cst_56 = arith.constant dense<0xFF800000> : vector<8xf32>
    %121 = vector.multi_reduction <maximumf>, %120, %cst_56 [1] : vector<8x8xf32> to vector<8xf32>
    %122 = vector.shape_cast %121 : vector<8xf32> to vector<8x1xf32>
    %123 = vector.broadcast %122 : vector<8x1xf32> to vector<8x8xf32>
    %124 = arith.subf %120, %123 : vector<8x8xf32>
    %125 = math.exp %124 : vector<8x8xf32>
    %cst_57 = arith.constant dense<0.000000e+00> : vector<8xf32>
    %126 = vector.multi_reduction <add>, %125, %cst_57 [1] : vector<8x8xf32> to vector<8xf32>
    %127 = vector.shape_cast %126 : vector<8xf32> to vector<8x1xf32>
    %128 = tpu.reciprocal %127 {approx = true} : vector<8x1xf32> -> vector<8x1xf32>
    %129 = vector.broadcast %128 : vector<8x1xf32> to vector<8x8xf32>
    %130 = arith.mulf %125, %129 : vector<8x8xf32>
    %cst_58 = arith.constant dense<0.000000e+00> : vector<8x8xf32>
    %131 = tpu.matmul %130, %117, %cst_58 {dimension_numbers = #tpu.dot_dimension_numbers<[1], [0], [0], [1], [0, 0, 1, 1], [], []>} : vector<8x8xf32>, vector<8x8xf32>, vector<8x8xf32> -> vector<8x8xf32>
    %132 = vector.extract_strided_slice %12 {offsets = [8, 16], sizes = [8, 8], strides = [1, 1]} : vector<16x32xf32> to vector<8x8xf32>
    %133 = vector.extract_strided_slice %20 {offsets = [8, 16], sizes = [8, 8], strides = [1, 1]} : vector<16x32xf32> to vector<8x8xf32>
    %134 = vector.extract_strided_slice %28 {offsets = [8, 16], sizes = [8, 8], strides = [1, 1]} : vector<16x32xf32> to vector<8x8xf32>
    %cst_59 = arith.constant dense<0.000000e+00> : vector<8x8xf32>
    %135 = tpu.matmul %132, %133, %cst_59 {dimension_numbers = #tpu.dot_dimension_numbers<[1], [1], [0], [0], [0, 0, 1, 0], [], []>} : vector<8x8xf32>, vector<8x8xf32>, vector<8x8xf32> -> vector<8x8xf32>
    %cst_60 = arith.constant 0.353553385 : f32
    %136 = vector.broadcast %cst_60 : f32 to vector<8x8xf32>
    %137 = arith.mulf %135, %136 : vector<8x8xf32>
    %cst_61 = arith.constant dense<0xFF800000> : vector<8xf32>
    %138 = vector.multi_reduction <maximumf>, %137, %cst_61 [1] : vector<8x8xf32> to vector<8xf32>
    %139 = vector.shape_cast %138 : vector<8xf32> to vector<8x1xf32>
    %140 = vector.broadcast %139 : vector<8x1xf32> to vector<8x8xf32>
    %141 = arith.subf %137, %140 : vector<8x8xf32>
    %142 = math.exp %141 : vector<8x8xf32>
    %cst_62 = arith.constant dense<0.000000e+00> : vector<8xf32>
    %143 = vector.multi_reduction <add>, %142, %cst_62 [1] : vector<8x8xf32> to vector<8xf32>
    %144 = vector.shape_cast %143 : vector<8xf32> to vector<8x1xf32>
    %145 = tpu.reciprocal %144 {approx = true} : vector<8x1xf32> -> vector<8x1xf32>
    %146 = vector.broadcast %145 : vector<8x1xf32> to vector<8x8xf32>
    %147 = arith.mulf %142, %146 : vector<8x8xf32>
    %cst_63 = arith.constant dense<0.000000e+00> : vector<8x8xf32>
    %148 = tpu.matmul %147, %134, %cst_63 {dimension_numbers = #tpu.dot_dimension_numbers<[1], [0], [0], [1], [0, 0, 1, 1], [], []>} : vector<8x8xf32>, vector<8x8xf32>, vector<8x8xf32> -> vector<8x8xf32>
    %149 = vector.extract_strided_slice %12 {offsets = [8, 24], sizes = [8, 8], strides = [1, 1]} : vector<16x32xf32> to vector<8x8xf32>
    %150 = vector.extract_strided_slice %20 {offsets = [8, 24], sizes = [8, 8], strides = [1, 1]} : vector<16x32xf32> to vector<8x8xf32>
    %151 = vector.extract_strided_slice %28 {offsets = [8, 24], sizes = [8, 8], strides = [1, 1]} : vector<16x32xf32> to vector<8x8xf32>
    %cst_64 = arith.constant dense<0.000000e+00> : vector<8x8xf32>
    %152 = tpu.matmul %149, %150, %cst_64 {dimension_numbers = #tpu.dot_dimension_numbers<[1], [1], [0], [0], [0, 0, 1, 0], [], []>} : vector<8x8xf32>, vector<8x8xf32>, vector<8x8xf32> -> vector<8x8xf32>
    %cst_65 = arith.constant 0.353553385 : f32
    %153 = vector.broadcast %cst_65 : f32 to vector<8x8xf32>
    %154 = arith.mulf %152, %153 : vector<8x8xf32>
    %cst_66 = arith.constant dense<0xFF800000> : vector<8xf32>
    %155 = vector.multi_reduction <maximumf>, %154, %cst_66 [1] : vector<8x8xf32> to vector<8xf32>
    %156 = vector.shape_cast %155 : vector<8xf32> to vector<8x1xf32>
    %157 = vector.broadcast %156 : vector<8x1xf32> to vector<8x8xf32>
    %158 = arith.subf %154, %157 : vector<8x8xf32>
    %159 = math.exp %158 : vector<8x8xf32>
    %cst_67 = arith.constant dense<0.000000e+00> : vector<8xf32>
    %160 = vector.multi_reduction <add>, %159, %cst_67 [1] : vector<8x8xf32> to vector<8xf32>
    %161 = vector.shape_cast %160 : vector<8xf32> to vector<8x1xf32>
    %162 = tpu.reciprocal %161 {approx = true} : vector<8x1xf32> -> vector<8x1xf32>
    %163 = vector.broadcast %162 : vector<8x1xf32> to vector<8x8xf32>
    %164 = arith.mulf %159, %163 : vector<8x8xf32>
    %cst_68 = arith.constant dense<0.000000e+00> : vector<8x8xf32>
    %165 = tpu.matmul %164, %151, %cst_68 {dimension_numbers = #tpu.dot_dimension_numbers<[1], [0], [0], [1], [0, 0, 1, 1], [], []>} : vector<8x8xf32>, vector<8x8xf32>, vector<8x8xf32> -> vector<8x8xf32>
    %166 = tpu.concatenate %114, %131, %148, %165 in 1 : vector<8x8xf32>, vector<8x8xf32>, vector<8x8xf32>, vector<8x8xf32> -> vector<8x32xf32>
    %167 = tpu.concatenate %97, %166 in 0 : vector<8x32xf32>, vector<8x32xf32> -> vector<16x32xf32>
    %168 = arith.truncf %167 : vector<16x32xf32> to vector<16x32xbf16>
    %c0_69 = arith.constant 0 : index
    %c3 = arith.constant 3 : index
    %c0_70 = arith.constant 0 : index
    %c0_71 = arith.constant 0 : index
    %169 = vector.load %arg1[%c0_69, %c3, %c0_70, %c0_71] : memref<2x5x32x32xbf16, #tpu.memory_space<vmem>>, vector<1x1x32x32xbf16>
    %170 = vector.shape_cast %169 : vector<1x1x32x32xbf16> to vector<32x32xbf16>
    %cst_72 = arith.constant dense<0.000000e+00> : vector<16x32xf32>
    %171 = tpu.matmul %168, %170, %cst_72 {dimension_numbers = #tpu.dot_dimension_numbers<[1], [0], [0], [1], [0, 0, 1, 1], [], []>} : vector<16x32xbf16>, vector<32x32xbf16>, vector<16x32xf32> -> vector<16x32xf32>
    %c0_73 = arith.constant 0 : index
    %c3_74 = arith.constant 3 : index
    %c0_75 = arith.constant 0 : index
    %c0_76 = arith.constant 0 : index
    %172 = vector.load %arg2[%c0_73, %c3_74, %c0_75, %c0_76] : memref<2x4x1x32xf32, #tpu.memory_space<vmem>>, vector<1x1x1x32xf32>
    %173 = vector.shape_cast %172 : vector<1x1x1x32xf32> to vector<1x32xf32>
    %174 = vector.broadcast %173 : vector<1x32xf32> to vector<16x32xf32>
    %175 = arith.addf %171, %174 : vector<16x32xf32>
    %176 = arith.addf %175, %1 : vector<16x32xf32>
    %177 = arith.truncf %176 : vector<16x32xf32> to vector<16x32xbf16>
    %c0_77 = arith.constant 0 : index
    %c4 = arith.constant 4 : index
    %c0_78 = arith.constant 0 : index
    %c0_79 = arith.constant 0 : index
    %178 = vector.load %arg1[%c0_77, %c4, %c0_78, %c0_79] : memref<2x5x32x32xbf16, #tpu.memory_space<vmem>>, vector<1x1x32x32xbf16>
    %179 = vector.shape_cast %178 : vector<1x1x32x32xbf16> to vector<32x32xbf16>
    %cst_80 = arith.constant dense<0.000000e+00> : vector<16x32xf32>
    %180 = tpu.matmul %177, %179, %cst_80 {dimension_numbers = #tpu.dot_dimension_numbers<[1], [0], [0], [1], [0, 0, 1, 1], [], []>} : vector<16x32xbf16>, vector<32x32xbf16>, vector<16x32xf32> -> vector<16x32xf32>
    %181 = arith.addf %180, %176 : vector<16x32xf32>
    %182 = arith.addf %181, %3 : vector<16x32xf32>
    %183 = arith.truncf %181 : vector<16x32xf32> to vector<16x32xbf16>
    %c1_81 = arith.constant 1 : index
    %c0_82 = arith.constant 0 : index
    %c0_83 = arith.constant 0 : index
    %c0_84 = arith.constant 0 : index
    %184 = vector.load %arg1[%c1_81, %c0_82, %c0_83, %c0_84] : memref<2x5x32x32xbf16, #tpu.memory_space<vmem>>, vector<1x1x32x32xbf16>
    %185 = vector.shape_cast %184 : vector<1x1x32x32xbf16> to vector<32x32xbf16>
    %cst_85 = arith.constant dense<0.000000e+00> : vector<16x32xf32>
    %186 = tpu.matmul %183, %185, %cst_85 {dimension_numbers = #tpu.dot_dimension_numbers<[1], [0], [0], [1], [0, 0, 1, 1], [], []>} : vector<16x32xbf16>, vector<32x32xbf16>, vector<16x32xf32> -> vector<16x32xf32>
    %c1_86 = arith.constant 1 : index
    %c0_87 = arith.constant 0 : index
    %c0_88 = arith.constant 0 : index
    %c0_89 = arith.constant 0 : index
    %187 = vector.load %arg2[%c1_86, %c0_87, %c0_88, %c0_89] : memref<2x4x1x32xf32, #tpu.memory_space<vmem>>, vector<1x1x1x32xf32>
    %188 = vector.shape_cast %187 : vector<1x1x1x32xf32> to vector<1x32xf32>
    %189 = vector.broadcast %188 : vector<1x32xf32> to vector<16x32xf32>
    %190 = arith.addf %186, %189 : vector<16x32xf32>
    %191 = arith.truncf %182 : vector<16x32xf32> to vector<16x32xbf16>
    %c1_90 = arith.constant 1 : index
    %c1_91 = arith.constant 1 : index
    %c0_92 = arith.constant 0 : index
    %c0_93 = arith.constant 0 : index
    %192 = vector.load %arg1[%c1_90, %c1_91, %c0_92, %c0_93] : memref<2x5x32x32xbf16, #tpu.memory_space<vmem>>, vector<1x1x32x32xbf16>
    %193 = vector.shape_cast %192 : vector<1x1x32x32xbf16> to vector<32x32xbf16>
    %cst_94 = arith.constant dense<0.000000e+00> : vector<16x32xf32>
    %194 = tpu.matmul %191, %193, %cst_94 {dimension_numbers = #tpu.dot_dimension_numbers<[1], [0], [0], [1], [0, 0, 1, 1], [], []>} : vector<16x32xbf16>, vector<32x32xbf16>, vector<16x32xf32> -> vector<16x32xf32>
    %c1_95 = arith.constant 1 : index
    %c1_96 = arith.constant 1 : index
    %c0_97 = arith.constant 0 : index
    %c0_98 = arith.constant 0 : index
    %195 = vector.load %arg2[%c1_95, %c1_96, %c0_97, %c0_98] : memref<2x4x1x32xf32, #tpu.memory_space<vmem>>, vector<1x1x1x32xf32>
    %196 = vector.shape_cast %195 : vector<1x1x1x32xf32> to vector<1x32xf32>
    %197 = vector.broadcast %196 : vector<1x32xf32> to vector<16x32xf32>
    %198 = arith.addf %194, %197 : vector<16x32xf32>
    %199 = arith.truncf %182 : vector<16x32xf32> to vector<16x32xbf16>
    %c1_99 = arith.constant 1 : index
    %c2_100 = arith.constant 2 : index
    %c0_101 = arith.constant 0 : index
    %c0_102 = arith.constant 0 : index
    %200 = vector.load %arg1[%c1_99, %c2_100, %c0_101, %c0_102] : memref<2x5x32x32xbf16, #tpu.memory_space<vmem>>, vector<1x1x32x32xbf16>
    %201 = vector.shape_cast %200 : vector<1x1x32x32xbf16> to vector<32x32xbf16>
    %cst_103 = arith.constant dense<0.000000e+00> : vector<16x32xf32>
    %202 = tpu.matmul %199, %201, %cst_103 {dimension_numbers = #tpu.dot_dimension_numbers<[1], [0], [0], [1], [0, 0, 1, 1], [], []>} : vector<16x32xbf16>, vector<32x32xbf16>, vector<16x32xf32> -> vector<16x32xf32>
    %c1_104 = arith.constant 1 : index
    %c2_105 = arith.constant 2 : index
    %c0_106 = arith.constant 0 : index
    %c0_107 = arith.constant 0 : index
    %203 = vector.load %arg2[%c1_104, %c2_105, %c0_106, %c0_107] : memref<2x4x1x32xf32, #tpu.memory_space<vmem>>, vector<1x1x1x32xf32>
    %204 = vector.shape_cast %203 : vector<1x1x1x32xf32> to vector<1x32xf32>
    %205 = vector.broadcast %204 : vector<1x32xf32> to vector<16x32xf32>
    %206 = arith.addf %202, %205 : vector<16x32xf32>
    %207 = vector.extract_strided_slice %190 {offsets = [0, 0], sizes = [8, 8], strides = [1, 1]} : vector<16x32xf32> to vector<8x8xf32>
    %208 = vector.extract_strided_slice %198 {offsets = [0, 0], sizes = [8, 8], strides = [1, 1]} : vector<16x32xf32> to vector<8x8xf32>
    %209 = vector.extract_strided_slice %206 {offsets = [0, 0], sizes = [8, 8], strides = [1, 1]} : vector<16x32xf32> to vector<8x8xf32>
    %cst_108 = arith.constant dense<0.000000e+00> : vector<8x8xf32>
    %210 = tpu.matmul %207, %208, %cst_108 {dimension_numbers = #tpu.dot_dimension_numbers<[1], [1], [0], [0], [0, 0, 1, 0], [], []>} : vector<8x8xf32>, vector<8x8xf32>, vector<8x8xf32> -> vector<8x8xf32>
    %cst_109 = arith.constant 0.353553385 : f32
    %211 = vector.broadcast %cst_109 : f32 to vector<8x8xf32>
    %212 = arith.mulf %210, %211 : vector<8x8xf32>
    %cst_110 = arith.constant dense<0xFF800000> : vector<8xf32>
    %213 = vector.multi_reduction <maximumf>, %212, %cst_110 [1] : vector<8x8xf32> to vector<8xf32>
    %214 = vector.shape_cast %213 : vector<8xf32> to vector<8x1xf32>
    %215 = vector.broadcast %214 : vector<8x1xf32> to vector<8x8xf32>
    %216 = arith.subf %212, %215 : vector<8x8xf32>
    %217 = math.exp %216 : vector<8x8xf32>
    %cst_111 = arith.constant dense<0.000000e+00> : vector<8xf32>
    %218 = vector.multi_reduction <add>, %217, %cst_111 [1] : vector<8x8xf32> to vector<8xf32>
    %219 = vector.shape_cast %218 : vector<8xf32> to vector<8x1xf32>
    %220 = tpu.reciprocal %219 {approx = true} : vector<8x1xf32> -> vector<8x1xf32>
    %221 = vector.broadcast %220 : vector<8x1xf32> to vector<8x8xf32>
    %222 = arith.mulf %217, %221 : vector<8x8xf32>
    %cst_112 = arith.constant dense<0.000000e+00> : vector<8x8xf32>
    %223 = tpu.matmul %222, %209, %cst_112 {dimension_numbers = #tpu.dot_dimension_numbers<[1], [0], [0], [1], [0, 0, 1, 1], [], []>} : vector<8x8xf32>, vector<8x8xf32>, vector<8x8xf32> -> vector<8x8xf32>
    %224 = vector.extract_strided_slice %190 {offsets = [0, 8], sizes = [8, 8], strides = [1, 1]} : vector<16x32xf32> to vector<8x8xf32>
    %225 = vector.extract_strided_slice %198 {offsets = [0, 8], sizes = [8, 8], strides = [1, 1]} : vector<16x32xf32> to vector<8x8xf32>
    %226 = vector.extract_strided_slice %206 {offsets = [0, 8], sizes = [8, 8], strides = [1, 1]} : vector<16x32xf32> to vector<8x8xf32>
    %cst_113 = arith.constant dense<0.000000e+00> : vector<8x8xf32>
    %227 = tpu.matmul %224, %225, %cst_113 {dimension_numbers = #tpu.dot_dimension_numbers<[1], [1], [0], [0], [0, 0, 1, 0], [], []>} : vector<8x8xf32>, vector<8x8xf32>, vector<8x8xf32> -> vector<8x8xf32>
    %cst_114 = arith.constant 0.353553385 : f32
    %228 = vector.broadcast %cst_114 : f32 to vector<8x8xf32>
    %229 = arith.mulf %227, %228 : vector<8x8xf32>
    %cst_115 = arith.constant dense<0xFF800000> : vector<8xf32>
    %230 = vector.multi_reduction <maximumf>, %229, %cst_115 [1] : vector<8x8xf32> to vector<8xf32>
    %231 = vector.shape_cast %230 : vector<8xf32> to vector<8x1xf32>
    %232 = vector.broadcast %231 : vector<8x1xf32> to vector<8x8xf32>
    %233 = arith.subf %229, %232 : vector<8x8xf32>
    %234 = math.exp %233 : vector<8x8xf32>
    %cst_116 = arith.constant dense<0.000000e+00> : vector<8xf32>
    %235 = vector.multi_reduction <add>, %234, %cst_116 [1] : vector<8x8xf32> to vector<8xf32>
    %236 = vector.shape_cast %235 : vector<8xf32> to vector<8x1xf32>
    %237 = tpu.reciprocal %236 {approx = true} : vector<8x1xf32> -> vector<8x1xf32>
    %238 = vector.broadcast %237 : vector<8x1xf32> to vector<8x8xf32>
    %239 = arith.mulf %234, %238 : vector<8x8xf32>
    %cst_117 = arith.constant dense<0.000000e+00> : vector<8x8xf32>
    %240 = tpu.matmul %239, %226, %cst_117 {dimension_numbers = #tpu.dot_dimension_numbers<[1], [0], [0], [1], [0, 0, 1, 1], [], []>} : vector<8x8xf32>, vector<8x8xf32>, vector<8x8xf32> -> vector<8x8xf32>
    %241 = vector.extract_strided_slice %190 {offsets = [0, 16], sizes = [8, 8], strides = [1, 1]} : vector<16x32xf32> to vector<8x8xf32>
    %242 = vector.extract_strided_slice %198 {offsets = [0, 16], sizes = [8, 8], strides = [1, 1]} : vector<16x32xf32> to vector<8x8xf32>
    %243 = vector.extract_strided_slice %206 {offsets = [0, 16], sizes = [8, 8], strides = [1, 1]} : vector<16x32xf32> to vector<8x8xf32>
    %cst_118 = arith.constant dense<0.000000e+00> : vector<8x8xf32>
    %244 = tpu.matmul %241, %242, %cst_118 {dimension_numbers = #tpu.dot_dimension_numbers<[1], [1], [0], [0], [0, 0, 1, 0], [], []>} : vector<8x8xf32>, vector<8x8xf32>, vector<8x8xf32> -> vector<8x8xf32>
    %cst_119 = arith.constant 0.353553385 : f32
    %245 = vector.broadcast %cst_119 : f32 to vector<8x8xf32>
    %246 = arith.mulf %244, %245 : vector<8x8xf32>
    %cst_120 = arith.constant dense<0xFF800000> : vector<8xf32>
    %247 = vector.multi_reduction <maximumf>, %246, %cst_120 [1] : vector<8x8xf32> to vector<8xf32>
    %248 = vector.shape_cast %247 : vector<8xf32> to vector<8x1xf32>
    %249 = vector.broadcast %248 : vector<8x1xf32> to vector<8x8xf32>
    %250 = arith.subf %246, %249 : vector<8x8xf32>
    %251 = math.exp %250 : vector<8x8xf32>
    %cst_121 = arith.constant dense<0.000000e+00> : vector<8xf32>
    %252 = vector.multi_reduction <add>, %251, %cst_121 [1] : vector<8x8xf32> to vector<8xf32>
    %253 = vector.shape_cast %252 : vector<8xf32> to vector<8x1xf32>
    %254 = tpu.reciprocal %253 {approx = true} : vector<8x1xf32> -> vector<8x1xf32>
    %255 = vector.broadcast %254 : vector<8x1xf32> to vector<8x8xf32>
    %256 = arith.mulf %251, %255 : vector<8x8xf32>
    %cst_122 = arith.constant dense<0.000000e+00> : vector<8x8xf32>
    %257 = tpu.matmul %256, %243, %cst_122 {dimension_numbers = #tpu.dot_dimension_numbers<[1], [0], [0], [1], [0, 0, 1, 1], [], []>} : vector<8x8xf32>, vector<8x8xf32>, vector<8x8xf32> -> vector<8x8xf32>
    %258 = vector.extract_strided_slice %190 {offsets = [0, 24], sizes = [8, 8], strides = [1, 1]} : vector<16x32xf32> to vector<8x8xf32>
    %259 = vector.extract_strided_slice %198 {offsets = [0, 24], sizes = [8, 8], strides = [1, 1]} : vector<16x32xf32> to vector<8x8xf32>
    %260 = vector.extract_strided_slice %206 {offsets = [0, 24], sizes = [8, 8], strides = [1, 1]} : vector<16x32xf32> to vector<8x8xf32>
    %cst_123 = arith.constant dense<0.000000e+00> : vector<8x8xf32>
    %261 = tpu.matmul %258, %259, %cst_123 {dimension_numbers = #tpu.dot_dimension_numbers<[1], [1], [0], [0], [0, 0, 1, 0], [], []>} : vector<8x8xf32>, vector<8x8xf32>, vector<8x8xf32> -> vector<8x8xf32>
    %cst_124 = arith.constant 0.353553385 : f32
    %262 = vector.broadcast %cst_124 : f32 to vector<8x8xf32>
    %263 = arith.mulf %261, %262 : vector<8x8xf32>
    %cst_125 = arith.constant dense<0xFF800000> : vector<8xf32>
    %264 = vector.multi_reduction <maximumf>, %263, %cst_125 [1] : vector<8x8xf32> to vector<8xf32>
    %265 = vector.shape_cast %264 : vector<8xf32> to vector<8x1xf32>
    %266 = vector.broadcast %265 : vector<8x1xf32> to vector<8x8xf32>
    %267 = arith.subf %263, %266 : vector<8x8xf32>
    %268 = math.exp %267 : vector<8x8xf32>
    %cst_126 = arith.constant dense<0.000000e+00> : vector<8xf32>
    %269 = vector.multi_reduction <add>, %268, %cst_126 [1] : vector<8x8xf32> to vector<8xf32>
    %270 = vector.shape_cast %269 : vector<8xf32> to vector<8x1xf32>
    %271 = tpu.reciprocal %270 {approx = true} : vector<8x1xf32> -> vector<8x1xf32>
    %272 = vector.broadcast %271 : vector<8x1xf32> to vector<8x8xf32>
    %273 = arith.mulf %268, %272 : vector<8x8xf32>
    %cst_127 = arith.constant dense<0.000000e+00> : vector<8x8xf32>
    %274 = tpu.matmul %273, %260, %cst_127 {dimension_numbers = #tpu.dot_dimension_numbers<[1], [0], [0], [1], [0, 0, 1, 1], [], []>} : vector<8x8xf32>, vector<8x8xf32>, vector<8x8xf32> -> vector<8x8xf32>
    %275 = tpu.concatenate %223, %240, %257, %274 in 1 : vector<8x8xf32>, vector<8x8xf32>, vector<8x8xf32>, vector<8x8xf32> -> vector<8x32xf32>
    %276 = vector.extract_strided_slice %190 {offsets = [8, 0], sizes = [8, 8], strides = [1, 1]} : vector<16x32xf32> to vector<8x8xf32>
    %277 = vector.extract_strided_slice %198 {offsets = [8, 0], sizes = [8, 8], strides = [1, 1]} : vector<16x32xf32> to vector<8x8xf32>
    %278 = vector.extract_strided_slice %206 {offsets = [8, 0], sizes = [8, 8], strides = [1, 1]} : vector<16x32xf32> to vector<8x8xf32>
    %cst_128 = arith.constant dense<0.000000e+00> : vector<8x8xf32>
    %279 = tpu.matmul %276, %277, %cst_128 {dimension_numbers = #tpu.dot_dimension_numbers<[1], [1], [0], [0], [0, 0, 1, 0], [], []>} : vector<8x8xf32>, vector<8x8xf32>, vector<8x8xf32> -> vector<8x8xf32>
    %cst_129 = arith.constant 0.353553385 : f32
    %280 = vector.broadcast %cst_129 : f32 to vector<8x8xf32>
    %281 = arith.mulf %279, %280 : vector<8x8xf32>
    %cst_130 = arith.constant dense<0xFF800000> : vector<8xf32>
    %282 = vector.multi_reduction <maximumf>, %281, %cst_130 [1] : vector<8x8xf32> to vector<8xf32>
    %283 = vector.shape_cast %282 : vector<8xf32> to vector<8x1xf32>
    %284 = vector.broadcast %283 : vector<8x1xf32> to vector<8x8xf32>
    %285 = arith.subf %281, %284 : vector<8x8xf32>
    %286 = math.exp %285 : vector<8x8xf32>
    %cst_131 = arith.constant dense<0.000000e+00> : vector<8xf32>
    %287 = vector.multi_reduction <add>, %286, %cst_131 [1] : vector<8x8xf32> to vector<8xf32>
    %288 = vector.shape_cast %287 : vector<8xf32> to vector<8x1xf32>
    %289 = tpu.reciprocal %288 {approx = true} : vector<8x1xf32> -> vector<8x1xf32>
    %290 = vector.broadcast %289 : vector<8x1xf32> to vector<8x8xf32>
    %291 = arith.mulf %286, %290 : vector<8x8xf32>
    %cst_132 = arith.constant dense<0.000000e+00> : vector<8x8xf32>
    %292 = tpu.matmul %291, %278, %cst_132 {dimension_numbers = #tpu.dot_dimension_numbers<[1], [0], [0], [1], [0, 0, 1, 1], [], []>} : vector<8x8xf32>, vector<8x8xf32>, vector<8x8xf32> -> vector<8x8xf32>
    %293 = vector.extract_strided_slice %190 {offsets = [8, 8], sizes = [8, 8], strides = [1, 1]} : vector<16x32xf32> to vector<8x8xf32>
    %294 = vector.extract_strided_slice %198 {offsets = [8, 8], sizes = [8, 8], strides = [1, 1]} : vector<16x32xf32> to vector<8x8xf32>
    %295 = vector.extract_strided_slice %206 {offsets = [8, 8], sizes = [8, 8], strides = [1, 1]} : vector<16x32xf32> to vector<8x8xf32>
    %cst_133 = arith.constant dense<0.000000e+00> : vector<8x8xf32>
    %296 = tpu.matmul %293, %294, %cst_133 {dimension_numbers = #tpu.dot_dimension_numbers<[1], [1], [0], [0], [0, 0, 1, 0], [], []>} : vector<8x8xf32>, vector<8x8xf32>, vector<8x8xf32> -> vector<8x8xf32>
    %cst_134 = arith.constant 0.353553385 : f32
    %297 = vector.broadcast %cst_134 : f32 to vector<8x8xf32>
    %298 = arith.mulf %296, %297 : vector<8x8xf32>
    %cst_135 = arith.constant dense<0xFF800000> : vector<8xf32>
    %299 = vector.multi_reduction <maximumf>, %298, %cst_135 [1] : vector<8x8xf32> to vector<8xf32>
    %300 = vector.shape_cast %299 : vector<8xf32> to vector<8x1xf32>
    %301 = vector.broadcast %300 : vector<8x1xf32> to vector<8x8xf32>
    %302 = arith.subf %298, %301 : vector<8x8xf32>
    %303 = math.exp %302 : vector<8x8xf32>
    %cst_136 = arith.constant dense<0.000000e+00> : vector<8xf32>
    %304 = vector.multi_reduction <add>, %303, %cst_136 [1] : vector<8x8xf32> to vector<8xf32>
    %305 = vector.shape_cast %304 : vector<8xf32> to vector<8x1xf32>
    %306 = tpu.reciprocal %305 {approx = true} : vector<8x1xf32> -> vector<8x1xf32>
    %307 = vector.broadcast %306 : vector<8x1xf32> to vector<8x8xf32>
    %308 = arith.mulf %303, %307 : vector<8x8xf32>
    %cst_137 = arith.constant dense<0.000000e+00> : vector<8x8xf32>
    %309 = tpu.matmul %308, %295, %cst_137 {dimension_numbers = #tpu.dot_dimension_numbers<[1], [0], [0], [1], [0, 0, 1, 1], [], []>} : vector<8x8xf32>, vector<8x8xf32>, vector<8x8xf32> -> vector<8x8xf32>
    %310 = vector.extract_strided_slice %190 {offsets = [8, 16], sizes = [8, 8], strides = [1, 1]} : vector<16x32xf32> to vector<8x8xf32>
    %311 = vector.extract_strided_slice %198 {offsets = [8, 16], sizes = [8, 8], strides = [1, 1]} : vector<16x32xf32> to vector<8x8xf32>
    %312 = vector.extract_strided_slice %206 {offsets = [8, 16], sizes = [8, 8], strides = [1, 1]} : vector<16x32xf32> to vector<8x8xf32>
    %cst_138 = arith.constant dense<0.000000e+00> : vector<8x8xf32>
    %313 = tpu.matmul %310, %311, %cst_138 {dimension_numbers = #tpu.dot_dimension_numbers<[1], [1], [0], [0], [0, 0, 1, 0], [], []>} : vector<8x8xf32>, vector<8x8xf32>, vector<8x8xf32> -> vector<8x8xf32>
    %cst_139 = arith.constant 0.353553385 : f32
    %314 = vector.broadcast %cst_139 : f32 to vector<8x8xf32>
    %315 = arith.mulf %313, %314 : vector<8x8xf32>
    %cst_140 = arith.constant dense<0xFF800000> : vector<8xf32>
    %316 = vector.multi_reduction <maximumf>, %315, %cst_140 [1] : vector<8x8xf32> to vector<8xf32>
    %317 = vector.shape_cast %316 : vector<8xf32> to vector<8x1xf32>
    %318 = vector.broadcast %317 : vector<8x1xf32> to vector<8x8xf32>
    %319 = arith.subf %315, %318 : vector<8x8xf32>
    %320 = math.exp %319 : vector<8x8xf32>
    %cst_141 = arith.constant dense<0.000000e+00> : vector<8xf32>
    %321 = vector.multi_reduction <add>, %320, %cst_141 [1] : vector<8x8xf32> to vector<8xf32>
    %322 = vector.shape_cast %321 : vector<8xf32> to vector<8x1xf32>
    %323 = tpu.reciprocal %322 {approx = true} : vector<8x1xf32> -> vector<8x1xf32>
    %324 = vector.broadcast %323 : vector<8x1xf32> to vector<8x8xf32>
    %325 = arith.mulf %320, %324 : vector<8x8xf32>
    %cst_142 = arith.constant dense<0.000000e+00> : vector<8x8xf32>
    %326 = tpu.matmul %325, %312, %cst_142 {dimension_numbers = #tpu.dot_dimension_numbers<[1], [0], [0], [1], [0, 0, 1, 1], [], []>} : vector<8x8xf32>, vector<8x8xf32>, vector<8x8xf32> -> vector<8x8xf32>
    %327 = vector.extract_strided_slice %190 {offsets = [8, 24], sizes = [8, 8], strides = [1, 1]} : vector<16x32xf32> to vector<8x8xf32>
    %328 = vector.extract_strided_slice %198 {offsets = [8, 24], sizes = [8, 8], strides = [1, 1]} : vector<16x32xf32> to vector<8x8xf32>
    %329 = vector.extract_strided_slice %206 {offsets = [8, 24], sizes = [8, 8], strides = [1, 1]} : vector<16x32xf32> to vector<8x8xf32>
    %cst_143 = arith.constant dense<0.000000e+00> : vector<8x8xf32>
    %330 = tpu.matmul %327, %328, %cst_143 {dimension_numbers = #tpu.dot_dimension_numbers<[1], [1], [0], [0], [0, 0, 1, 0], [], []>} : vector<8x8xf32>, vector<8x8xf32>, vector<8x8xf32> -> vector<8x8xf32>
    %cst_144 = arith.constant 0.353553385 : f32
    %331 = vector.broadcast %cst_144 : f32 to vector<8x8xf32>
    %332 = arith.mulf %330, %331 : vector<8x8xf32>
    %cst_145 = arith.constant dense<0xFF800000> : vector<8xf32>
    %333 = vector.multi_reduction <maximumf>, %332, %cst_145 [1] : vector<8x8xf32> to vector<8xf32>
    %334 = vector.shape_cast %333 : vector<8xf32> to vector<8x1xf32>
    %335 = vector.broadcast %334 : vector<8x1xf32> to vector<8x8xf32>
    %336 = arith.subf %332, %335 : vector<8x8xf32>
    %337 = math.exp %336 : vector<8x8xf32>
    %cst_146 = arith.constant dense<0.000000e+00> : vector<8xf32>
    %338 = vector.multi_reduction <add>, %337, %cst_146 [1] : vector<8x8xf32> to vector<8xf32>
    %339 = vector.shape_cast %338 : vector<8xf32> to vector<8x1xf32>
    %340 = tpu.reciprocal %339 {approx = true} : vector<8x1xf32> -> vector<8x1xf32>
    %341 = vector.broadcast %340 : vector<8x1xf32> to vector<8x8xf32>
    %342 = arith.mulf %337, %341 : vector<8x8xf32>
    %cst_147 = arith.constant dense<0.000000e+00> : vector<8x8xf32>
    %343 = tpu.matmul %342, %329, %cst_147 {dimension_numbers = #tpu.dot_dimension_numbers<[1], [0], [0], [1], [0, 0, 1, 1], [], []>} : vector<8x8xf32>, vector<8x8xf32>, vector<8x8xf32> -> vector<8x8xf32>
    %344 = tpu.concatenate %292, %309, %326, %343 in 1 : vector<8x8xf32>, vector<8x8xf32>, vector<8x8xf32>, vector<8x8xf32> -> vector<8x32xf32>
    %345 = tpu.concatenate %275, %344 in 0 : vector<8x32xf32>, vector<8x32xf32> -> vector<16x32xf32>
    %346 = arith.truncf %345 : vector<16x32xf32> to vector<16x32xbf16>
    %c1_148 = arith.constant 1 : index
    %c3_149 = arith.constant 3 : index
    %c0_150 = arith.constant 0 : index
    %c0_151 = arith.constant 0 : index
    %347 = vector.load %arg1[%c1_148, %c3_149, %c0_150, %c0_151] : memref<2x5x32x32xbf16, #tpu.memory_space<vmem>>, vector<1x1x32x32xbf16>
    %348 = vector.shape_cast %347 : vector<1x1x32x32xbf16> to vector<32x32xbf16>
    %cst_152 = arith.constant dense<0.000000e+00> : vector<16x32xf32>
    %349 = tpu.matmul %346, %348, %cst_152 {dimension_numbers = #tpu.dot_dimension_numbers<[1], [0], [0], [1], [0, 0, 1, 1], [], []>} : vector<16x32xbf16>, vector<32x32xbf16>, vector<16x32xf32> -> vector<16x32xf32>
    %c1_153 = arith.constant 1 : index
    %c3_154 = arith.constant 3 : index
    %c0_155 = arith.constant 0 : index
    %c0_156 = arith.constant 0 : index
    %350 = vector.load %arg2[%c1_153, %c3_154, %c0_155, %c0_156] : memref<2x4x1x32xf32, #tpu.memory_space<vmem>>, vector<1x1x1x32xf32>
    %351 = vector.shape_cast %350 : vector<1x1x1x32xf32> to vector<1x32xf32>
    %352 = vector.broadcast %351 : vector<1x32xf32> to vector<16x32xf32>
    %353 = arith.addf %349, %352 : vector<16x32xf32>
    %354 = arith.addf %353, %181 : vector<16x32xf32>
    %355 = arith.truncf %354 : vector<16x32xf32> to vector<16x32xbf16>
    %c1_157 = arith.constant 1 : index
    %c4_158 = arith.constant 4 : index
    %c0_159 = arith.constant 0 : index
    %c0_160 = arith.constant 0 : index
    %356 = vector.load %arg1[%c1_157, %c4_158, %c0_159, %c0_160] : memref<2x5x32x32xbf16, #tpu.memory_space<vmem>>, vector<1x1x32x32xbf16>
    %357 = vector.shape_cast %356 : vector<1x1x32x32xbf16> to vector<32x32xbf16>
    %cst_161 = arith.constant dense<0.000000e+00> : vector<16x32xf32>
    %358 = tpu.matmul %355, %357, %cst_161 {dimension_numbers = #tpu.dot_dimension_numbers<[1], [0], [0], [1], [0, 0, 1, 1], [], []>} : vector<16x32xbf16>, vector<32x32xbf16>, vector<16x32xf32> -> vector<16x32xf32>
    %359 = arith.addf %358, %354 : vector<16x32xf32>
    %c0_162 = arith.constant 0 : index
    %c0_163 = arith.constant 0 : index
    %360 = vector.load %arg3[%c0_162, %c0_163] : memref<16x32xf32, #tpu.memory_space<vmem>>, vector<16x32xf32>
    tpu.vector_store %arg3[%c0_162, %c0_163], %359 {strides = array<i32>} : memref<16x32xf32, #tpu.memory_space<vmem>>, vector<16x32xf32>,
    return
  }
}

</mosaic_0001>

<llo_original>
// kernel: tpu_custom_call.1
$region0: #{tpu_custom_call.1}
  #allocation0 [shape = 'u32[]', space=smem, size = 0x4, offset = 0x4, fixed_abs, tag = 'smem constant byte address 0x4 - core index']
  #allocation1 [shape = 'u32[72,128]{1,0:T(1,128)}', space=vmem, size = 0x9000, scoped, tag = 'internal scratch']
  %s0 = inlined_call_operand.hbm [shape: f32[2,16,32], index: 0, kind: input, shape index: {}]
  %s1 = inlined_call_operand.hbm [shape: bf16[2,5,32,32], index: 1, kind: input, shape index: {}]
  %s2 = inlined_call_operand.hbm [shape: f32[2,4,1,32], index: 2, kind: input, shape index: {}]
  %s3 = inlined_call_operand.hbm [shape: f32[16,32], index: 3, kind: output, shape index: {}]
  %s4 = sld [smem:[#allocation0]]
  $region34: #{tpu_custom_call.1} parent=0
    _
  %s6 = ssub.s32 1, %s4
  %s7 = scalar_select 0, %s6, %s4
  $region1: #{tpu_custom_call.1} parent=0
    #allocation2 [shape = 'u8[16384]{0}', space=vmem, size = 0x4000, scoped, tag = 'input window, operand 0, single buffered']
    #allocation3 [shape = 's32[1]{0}', space=sflag, size = 0x4, scoped, tag = 'scoped memory for tpu_custom_call.1']
    #allocation4 [shape = 's32[1]{0}', space=sflag, size = 0x4, scoped, tag = 'scoped memory for tpu_custom_call.1']
    #allocation5 [shape = 'u8[81920]{0}', space=vmem, size = 0x14000, scoped, tag = 'input window, operand 1, single buffered']
    #allocation6 [shape = 's32[1]{0}', space=sflag, size = 0x4, scoped, tag = 'scoped memory for tpu_custom_call.1']
    #allocation7 [shape = 'u8[4096]{0}', space=vmem, size = 0x1000, scoped, tag = 'input window, operand 2, single buffered']
    #allocation8 [shape = 'u8[8192]{0}', space=vmem, size = 0x2000, scoped, tag = 'output window, operand 0, single buffered']
    %8 = vsyncpa [#allocation3], 0
    %9 = vsyncpa [#allocation6], 0
    %10 = vsyncpa [#allocation4], 0
    // Predicated region
    $region2: #{tpu_custom_call.1} parent=1 // pred_check
      _
    $region3: #{tpu_custom_call.1} parent=1 // pred_check_branch
      %12 = sbr.rel (0) target = $region5
    $region4: #{tpu_custom_call.1} parent=1 // pred_region
      %14 = vsyncadd [#allocation3], 0
      %s15 = sshll.u32 %s0, 4
      %s16 = int_to_ptr.hbm [resolvable:$true] %s15
      %s17 = sshll.u32 [#allocation2], 4
      %s18 = int_to_ptr.vmem [resolvable:$true] %s17
      %23 = dma.hbm_to_vmem [thread:$0]  %s16, 512, %s18, [#allocation3], 128, 128, 8
    $region5: #{tpu_custom_call.1} parent=1 // pred_fallthru
      _
    // Predicated region
    $region6: #{tpu_custom_call.1} parent=1 // pred_check
      _
    $region7: #{tpu_custom_call.1} parent=1 // pred_check_branch
      %25 = sbr.rel (0) target = $region9
    $region8: #{tpu_custom_call.1} parent=1 // pred_region
      %27 = vsyncadd [#allocation6], 0
      %s28 = sshll.u32 %s1, 4
      %s29 = int_to_ptr.hbm [resolvable:$true] %s28
      %s30 = sshll.u32 [#allocation5], 4
      %s31 = int_to_ptr.vmem [resolvable:$true] %s30
      %36 = dma.hbm_to_vmem [thread:$0]  %s29, 2560, %s31, [#allocation6], 64, 64, 4
    $region9: #{tpu_custom_call.1} parent=1 // pred_fallthru
      _
    // Predicated region
    $region10: #{tpu_custom_call.1} parent=1 // pred_check
      _
    $region11: #{tpu_custom_call.1} parent=1 // pred_check_branch
      %38 = sbr.rel (0) target = $region13
    $region12: #{tpu_custom_call.1} parent=1 // pred_region
      %40 = vsyncadd [#allocation6], 0
      %s41 = sshll.u32 %s2, 4
      %s42 = int_to_ptr.hbm [resolvable:$true] %s41
      %s43 = sshll.u32 [#allocation7], 4
      %s44 = int_to_ptr.vmem [resolvable:$true] %s43
      %49 = dma.hbm_to_vmem [thread:$0]  %s42, 128, %s44, [#allocation6], 16, 16, 1
    $region13: #{tpu_custom_call.1} parent=1 // pred_fallthru
      _
    // Predicated region
    $region14: #{tpu_custom_call.1} parent=1 // pred_check
      _
    $region15: #{tpu_custom_call.1} parent=1 // pred_check_branch
      %51 = sbr.rel (0) target = $region17
    $region16: #{tpu_custom_call.1} parent=1 // pred_region
      %53 = dma.done [#allocation3], 512
    $region17: #{tpu_custom_call.1} parent=1 // pred_fallthru
      _
    // Predicated region
    $region18: #{tpu_custom_call.1} parent=1 // pred_check
      _
    $region19: #{tpu_custom_call.1} parent=1 // pred_check_branch
      %55 = sbr.rel (0) target = $region21
    $region20: #{tpu_custom_call.1} parent=1 // pred_region
      %57 = dma.done [#allocation6], 2560
    $region21: #{tpu_custom_call.1} parent=1 // pred_fallthru
      _
    // Predicated region
    $region22: #{tpu_custom_call.1} parent=1 // pred_check
      _
    $region23: #{tpu_custom_call.1} parent=1 // pred_check_branch
      %59 = sbr.rel (0) target = $region25
    $region24: #{tpu_custom_call.1} parent=1 // pred_region
      %61 = dma.done [#allocation6], 128
    $region25: #{tpu_custom_call.1} parent=1 // pred_fallthru
      _
    %v63 = vld [vmem:[#allocation2] sm:$0xff]
    %v64 = vld [vmem:[#allocation2 + $0x8] sm:$0xff]
    %s65 = scalar_lea.vmem [#allocation2], 16
    %v66 = vld [vmem:[%s65] sm:$0xff]
    %v67 = vld [vmem:[%s65 + $0x8] sm:$0xff]
    %v68 = vadd.f32 %v63, %v66
    %v69 = vadd.f32 %v64, %v67
    %v70 = vpack.c.bf16 %v64, %v63
    %v71 = vld [vmem:[#allocation5] sm:$0xf]
    %v72 = vld [vmem:[#allocation5 + $0x4] sm:$0xf]
    %v73 = vld [vmem:[#allocation5 + $0x8] sm:$0xf]
    %v74 = vld [vmem:[#allocation5 + $0xc] sm:$0xf]
    %v75 = vld [vmem:[#allocation7] sm:$0x1]
    %v77 = vperm.slane %v75, 0
    %v83 = vunpack.c.l.b16 %v71
    %v84 = vunpack.c.l.b16 %v72
    %v85 = vunpack.c.l.b16 %v73
    %v86 = vunpack.c.l.b16 %v74
    %v87 = vpack.c.b16 %v84, %v83
    %v88 = vpack.c.b16 %v86, %v85
    %vm91 = vcmask 261120
    %v93 = vsel %vm91, %v70, 0
    %95 = vmatpush.bf16.msra.mxu0 0
    %96 = vmatpush.bf16.msra.mxu0 0
    %97 = vmatpush.bf16.msra.mxu0 0
    %98 = vmatpush.bf16.msra.mxu0 0
    %99 = vmatpush.bf16.msra.mxu0 0
    %100 = vmatpush.bf16.msra.mxu0 0
    %101 = vmatpush.bf16.msra.mxu0 %v88
    %102 = vmatpush.bf16.msra.mxu0 %v87
    %103 = vmatmul.bf16.gmra.mxu0 %v93
    %v104 = vpop.f32.mrf.mxu0
    %v105 = vadd.f32 %v77, %v104
    %v106 = vpop.f32.mrf.mxu0
    %v107 = vadd.f32 %v77, %v106
    %108 = vdwg.mxu0
    %v109 = vpack.c.bf16 %v69, %v68
    %s110 = scalar_lea.vmem [#allocation5], 16
    %v111 = vld [vmem:[%s110] sm:$0xf]
    %v112 = vld [vmem:[%s110 + $0x4] sm:$0xf]
    %v113 = vld [vmem:[%s110 + $0x8] sm:$0xf]
    %v114 = vld [vmem:[%s110 + $0xc] sm:$0xf]
    %s115 = scalar_lea.vmem [#allocation7], 1
    %v116 = vld [vmem:[%s115] sm:$0x1]
    %v118 = vperm.slane %v116, 0
    %v124 = vunpack.c.l.b16 %v111
    %v125 = vunpack.c.l.b16 %v112
    %v126 = vunpack.c.l.b16 %v113
    %v127 = vunpack.c.l.b16 %v114
    %v128 = vpack.c.b16 %v125, %v124
    %v129 = vpack.c.b16 %v127, %v126
    %v133 = vsel %vm91, %v109, 0
    %135 = vmatpush.bf16.msra.mxu0 0
    %136 = vmatpush.bf16.msra.mxu0 0
    %137 = vmatpush.bf16.msra.mxu0 0
    %138 = vmatpush.bf16.msra.mxu0 0
    %139 = vmatpush.bf16.msra.mxu0 0
    %140 = vmatpush.bf16.msra.mxu0 0
    %141 = vmatpush.bf16.msra.mxu0 %v129
    %142 = vmatpush.bf16.msra.mxu0 %v128
    %143 = vmatmul.bf16.gmra.mxu0 %v133
    %v144 = vpop.f32.mrf.mxu0
    %v145 = vadd.f32 %v118, %v144
    %v146 = vpop.f32.mrf.mxu0
    %v147 = vadd.f32 %v118, %v146
    %148 = vdwg.mxu0
    %s149 = scalar_lea.vmem [#allocation5], 32
    %v150 = vld [vmem:[%s149] sm:$0xf]
    %v151 = vld [vmem:[%s149 + $0x4] sm:$0xf]
    %v152 = vld [vmem:[%s149 + $0x8] sm:$0xf]
    %v153 = vld [vmem:[%s149 + $0xc] sm:$0xf]
    %s154 = scalar_lea.vmem [#allocation7], 2
    %v155 = vld [vmem:[%s154] sm:$0x1]
    %v157 = vperm.slane %v155, 0
    %v163 = vunpack.c.l.b16 %v150
    %v164 = vunpack.c.l.b16 %v151
    %v165 = vunpack.c.l.b16 %v152
    %v166 = vunpack.c.l.b16 %v153
    %v167 = vpack.c.b16 %v164, %v163
    %v168 = vpack.c.b16 %v166, %v165
    %171 = vmatpush.bf16.msra.mxu0 0
    %172 = vmatpush.bf16.msra.mxu0 0
    %173 = vmatpush.bf16.msra.mxu0 0
    %174 = vmatpush.bf16.msra.mxu0 0
    %175 = vmatpush.bf16.msra.mxu0 0
    %176 = vmatpush.bf16.msra.mxu0 0
    %177 = vmatpush.bf16.msra.mxu0 %v168
    %178 = vmatpush.bf16.msra.mxu0 %v167
    %179 = vmatmul.bf16.gmra.mxu0 %v133
    %v180 = vpop.f32.mrf.mxu0
    %v181 = vadd.f32 %v157, %v180
    %v182 = vpop.f32.mrf.mxu0
    %v183 = vadd.f32 %v157, %v182
    %184 = vdwg.mxu0
    %vm185 = vcmask 64512
    %v187 = vsel %vm185, %v105, 0
    %v190 = vsel %vm185, %v145, 0
    %192 = vmatpush.xpose.msra.mxu0 0.0
    %193 = vmatpush.xpose.msra.mxu0 0.0
    %194 = vmatpush.xpose.msra.mxu0 0.0
    %195 = vmatpush.xpose.msra.mxu0 0.0
    %196 = vmatpush.xpose.msra.mxu0 0.0
    %197 = vmatpush.xpose.msra.mxu0 0.0
    %198 = vmatpush.xpose.msra.mxu0 0.0
    %199 = vmatpush.xpose.msra.mxu0 0.0
    %200 = vmatpush.xpose.msra.mxu0 0.0
    %201 = vmatpush.xpose.msra.mxu0 0.0
    %202 = vmatpush.xpose.msra.mxu0 0.0
    %203 = vmatpush.xpose.msra.mxu0 0.0
    %204 = vmatpush.xpose.msra.mxu0 0.0
    %205 = vmatpush.xpose.msra.mxu0 0.0
    %206 = vmatpush.xpose.msra.mxu0 0.0
    %207 = vmatpush.xpose.msra.mxu0 %v190
    %208 = vmatmul.f32.gmra.mxu0 %v187
    %v209 = vpop.f32.mrf.mxu0
    %v210 = vadd.f32 0.0, %v209
    %211 = vdwg.mxu0
    %v212 = vmul.f32 %v210, 0.35355338
    %v213 = vsel %vm185, %v212, -inf
    %214 = vmax.xlane.f32.xlu0 %v213
    %v215 = vpop.xlane.xlu0 %214
    %v216 = vsub.f32 %v212, %v215
    %v217 = vmul.f32 %v216, 1.442695
    %v218 = vpow.pop %v217
    %v219 = vsel %vm185, %v218, 0.0
    %220 = vadd.xlane.f32.xlu0 %v219
    %v221 = vpop.xlane.xlu0 %220
    %v222 = vrcp.pop %v221
    %v223 = vmul.f32 %v218, %v222
    %v225 = vsel %vm185, %v223, 0
    %227 = vmatpush.msra.mxu0 0.0
    %228 = vmatpush.msra.mxu0 0.0
    %229 = vmatpush.msra.mxu0 0.0
    %230 = vmatpush.msra.mxu0 0.0
    %231 = vmatpush.msra.mxu0 0.0
    %232 = vmatpush.msra.mxu0 0.0
    %233 = vmatpush.msra.mxu0 0.0
    %234 = vmatpush.msra.mxu0 0.0
    %235 = vmatpush.msra.mxu0 0.0
    %236 = vmatpush.msra.mxu0 0.0
    %237 = vmatpush.msra.mxu0 0.0
    %238 = vmatpush.msra.mxu0 0.0
    %239 = vmatpush.msra.mxu0 0.0
    %240 = vmatpush.msra.mxu0 0.0
    %241 = vmatpush.msra.mxu0 0.0
    %242 = vmatpush.msra.mxu0 %v181
    %243 = vmatmul.f32.gmra.mxu0 %v225
    %v244 = vpop.f32.mrf.mxu0
    %v245 = vadd.f32 0.0, %v244
    %246 = vdwg.mxu0
    %247 = vrot.lane.b32.xlu0 %v105, 120
    %v248 = vpop.permute.xlu0 %247
    %249 = vrot.lane.b32.xlu0 %v145, 120
    %v250 = vpop.permute.xlu0 %249
    %v251 = vsel %vm185, %v248, 0
    %v253 = vsel %vm185, %v250, 0
    %255 = vmatpush.xpose.msra.mxu0 0.0
    %256 = vmatpush.xpose.msra.mxu0 0.0
    %257 = vmatpush.xpose.msra.mxu0 0.0
    %258 = vmatpush.xpose.msra.mxu0 0.0
    %259 = vmatpush.xpose.msra.mxu0 0.0
    %260 = vmatpush.xpose.msra.mxu0 0.0
    %261 = vmatpush.xpose.msra.mxu0 0.0
    %262 = vmatpush.xpose.msra.mxu0 0.0
    %263 = vmatpush.xpose.msra.mxu0 0.0
    %264 = vmatpush.xpose.msra.mxu0 0.0
    %265 = vmatpush.xpose.msra.mxu0 0.0
    %266 = vmatpush.xpose.msra.mxu0 0.0
    %267 = vmatpush.xpose.msra.mxu0 0.0
    %268 = vmatpush.xpose.msra.mxu0 0.0
    %269 = vmatpush.xpose.msra.mxu0 0.0
    %270 = vmatpush.xpose.msra.mxu0 %v253
    %271 = vmatmul.f32.gmra.mxu0 %v251
    %v272 = vpop.f32.mrf.mxu0
    %v273 = vadd.f32 0.0, %v272
    %274 = vdwg.mxu0
    %v275 = vmul.f32 %v273, 0.35355338
    %v276 = vsel %vm185, %v275, -inf
    %277 = vmax.xlane.f32.xlu0 %v276
    %v278 = vpop.xlane.xlu0 %277
    %v279 = vsub.f32 %v275, %v278
    %v280 = vmul.f32 %v279, 1.442695
    %v281 = vpow.pop %v280
    %v282 = vsel %vm185, %v281, 0.0
    %283 = vadd.xlane.f32.xlu0 %v282
    %v284 = vpop.xlane.xlu0 %283
    %v285 = vrcp.pop %v284
    %v286 = vmul.f32 %v281, %v285
    %288 = vrot.lane.b32.xlu0 %v181, 120
    %v289 = vpop.permute.xlu0 %288
    %v292 = vsel %vm185, %v286, 0
    %294 = vmatpush.msra.mxu0 0.0
    %295 = vmatpush.msra.mxu0 0.0
    %296 = vmatpush.msra.mxu0 0.0
    %297 = vmatpush.msra.mxu0 0.0
    %298 = vmatpush.msra.mxu0 0.0
    %299 = vmatpush.msra.mxu0 0.0
    %300 = vmatpush.msra.mxu0 0.0
    %301 = vmatpush.msra.mxu0 0.0
    %302 = vmatpush.msra.mxu0 0.0
    %303 = vmatpush.msra.mxu0 0.0
    %304 = vmatpush.msra.mxu0 0.0
    %305 = vmatpush.msra.mxu0 0.0
    %306 = vmatpush.msra.mxu0 0.0
    %307 = vmatpush.msra.mxu0 0.0
    %308 = vmatpush.msra.mxu0 0.0
    %309 = vmatpush.msra.mxu0 %v289
    %310 = vmatmul.f32.gmra.mxu0 %v292
    %v311 = vpop.f32.mrf.mxu0
    %v312 = vadd.f32 0.0, %v311
    %313 = vdwg.mxu0
    %314 = vrot.lane.b32.xlu0 %v105, 112
    %v315 = vpop.permute.xlu0 %314
    %316 = vrot.lane.b32.xlu0 %v145, 112
    %v317 = vpop.permute.xlu0 %316
    %v318 = vsel %vm185, %v315, 0
    %v320 = vsel %vm185, %v317, 0
    %322 = vmatpush.xpose.msra.mxu0 0.0
    %323 = vmatpush.xpose.msra.mxu0 0.0
    %324 = vmatpush.xpose.msra.mxu0 0.0
    %325 = vmatpush.xpose.msra.mxu0 0.0
    %326 = vmatpush.xpose.msra.mxu0 0.0
    %327 = vmatpush.xpose.msra.mxu0 0.0
    %328 = vmatpush.xpose.msra.mxu0 0.0
    %329 = vmatpush.xpose.msra.mxu0 0.0
    %330 = vmatpush.xpose.msra.mxu0 0.0
    %331 = vmatpush.xpose.msra.mxu0 0.0
    %332 = vmatpush.xpose.msra.mxu0 0.0
    %333 = vmatpush.xpose.msra.mxu0 0.0
    %334 = vmatpush.xpose.msra.mxu0 0.0
    %335 = vmatpush.xpose.msra.mxu0 0.0
    %336 = vmatpush.xpose.msra.mxu0 0.0
    %337 = vmatpush.xpose.msra.mxu0 %v320
    %338 = vmatmul.f32.gmra.mxu0 %v318
    %v339 = vpop.f32.mrf.mxu0
    %v340 = vadd.f32 0.0, %v339
    %341 = vdwg.mxu0
    %v342 = vmul.f32 %v340, 0.35355338
    %v343 = vsel %vm185, %v342, -inf
    %344 = vmax.xlane.f32.xlu0 %v343
    %v345 = vpop.xlane.xlu0 %344
    %v346 = vsub.f32 %v342, %v345
    %v347 = vmul.f32 %v346, 1.442695
    %v348 = vpow.pop %v347
    %v349 = vsel %vm185, %v348, 0.0
    %350 = vadd.xlane.f32.xlu0 %v349
    %v351 = vpop.xlane.xlu0 %350
    %v352 = vrcp.pop %v351
    %v353 = vmul.f32 %v348, %v352
    %354 = vrot.lane.b32.xlu0 %v181, 112
    %v355 = vpop.permute.xlu0 %354
    %v358 = vsel %vm185, %v353, 0
    %360 = vmatpush.msra.mxu0 0.0
    %361 = vmatpush.msra.mxu0 0.0
    %362 = vmatpush.msra.mxu0 0.0
    %363 = vmatpush.msra.mxu0 0.0
    %364 = vmatpush.msra.mxu0 0.0
    %365 = vmatpush.msra.mxu0 0.0
    %366 = vmatpush.msra.mxu0 0.0
    %367 = vmatpush.msra.mxu0 0.0
    %368 = vmatpush.msra.mxu0 0.0
    %369 = vmatpush.msra.mxu0 0.0
    %370 = vmatpush.msra.mxu0 0.0
    %371 = vmatpush.msra.mxu0 0.0
    %372 = vmatpush.msra.mxu0 0.0
    %373 = vmatpush.msra.mxu0 0.0
    %374 = vmatpush.msra.mxu0 0.0
    %375 = vmatpush.msra.mxu0 %v355
    %376 = vmatmul.f32.gmra.mxu0 %v358
    %v377 = vpop.f32.mrf.mxu0
    %v378 = vadd.f32 0.0, %v377
    %379 = vdwg.mxu0
    %380 = vrot.lane.b32.xlu0 %v105, 104
    %v381 = vpop.permute.xlu0 %380
    %382 = vrot.lane.b32.xlu0 %v145, 104
    %v383 = vpop.permute.xlu0 %382
    %v384 = vsel %vm185, %v381, 0
    %v386 = vsel %vm185, %v383, 0
    %388 = vmatpush.xpose.msra.mxu0 0.0
    %389 = vmatpush.xpose.msra.mxu0 0.0
    %390 = vmatpush.xpose.msra.mxu0 0.0
    %391 = vmatpush.xpose.msra.mxu0 0.0
    %392 = vmatpush.xpose.msra.mxu0 0.0
    %393 = vmatpush.xpose.msra.mxu0 0.0
    %394 = vmatpush.xpose.msra.mxu0 0.0
    %395 = vmatpush.xpose.msra.mxu0 0.0
    %396 = vmatpush.xpose.msra.mxu0 0.0
    %397 = vmatpush.xpose.msra.mxu0 0.0
    %398 = vmatpush.xpose.msra.mxu0 0.0
    %399 = vmatpush.xpose.msra.mxu0 0.0
    %400 = vmatpush.xpose.msra.mxu0 0.0
    %401 = vmatpush.xpose.msra.mxu0 0.0
    %402 = vmatpush.xpose.msra.mxu0 0.0
    %403 = vmatpush.xpose.msra.mxu0 %v386
    %404 = vmatmul.f32.gmra.mxu0 %v384
    %v405 = vpop.f32.mrf.mxu0
    %v406 = vadd.f32 0.0, %v405
    %407 = vdwg.mxu0
    %v408 = vmul.f32 %v406, 0.35355338
    %v409 = vsel %vm185, %v408, -inf
    %410 = vmax.xlane.f32.xlu0 %v409
    %v411 = vpop.xlane.xlu0 %410
    %v412 = vsub.f32 %v408, %v411
    %v413 = vmul.f32 %v412, 1.442695
    %v414 = vpow.pop %v413
    %v415 = vsel %vm185, %v414, 0.0
    %416 = vadd.xlane.f32.xlu0 %v415
    %v417 = vpop.xlane.xlu0 %416
    %v418 = vrcp.pop %v417
    %v419 = vmul.f32 %v414, %v418
    %420 = vrot.lane.b32.xlu0 %v181, 104
    %v421 = vpop.permute.xlu0 %420
    %v424 = vsel %vm185, %v419, 0
    %426 = vmatpush.msra.mxu0 0.0
    %427 = vmatpush.msra.mxu0 0.0
    %428 = vmatpush.msra.mxu0 0.0
    %429 = vmatpush.msra.mxu0 0.0
    %430 = vmatpush.msra.mxu0 0.0
    %431 = vmatpush.msra.mxu0 0.0
    %432 = vmatpush.msra.mxu0 0.0
    %433 = vmatpush.msra.mxu0 0.0
    %434 = vmatpush.msra.mxu0 0.0
    %435 = vmatpush.msra.mxu0 0.0
    %436 = vmatpush.msra.mxu0 0.0
    %437 = vmatpush.msra.mxu0 0.0
    %438 = vmatpush.msra.mxu0 0.0
    %439 = vmatpush.msra.mxu0 0.0
    %440 = vmatpush.msra.mxu0 0.0
    %441 = vmatpush.msra.mxu0 %v421
    %442 = vmatmul.f32.gmra.mxu0 %v424
    %v443 = vpop.f32.mrf.mxu0
    %v444 = vadd.f32 0.0, %v443
    %445 = vdwg.mxu0
    %447 = vrot.lane.b32.xlu0 %v312, 8
    %v448 = vpop.permute.xlu0 %447
    %451 = vrot.lane.b32.xlu0 %v378, 16
    %v452 = vpop.permute.xlu0 %451
    %455 = vrot.lane.b32.xlu0 %v444, 24
    %v456 = vpop.permute.xlu0 %455
    %v458 = vsel %vm185, %v245, %v448
    %vm459 = vcmask 130048
    %v460 = vsel %vm459, %v458, %v452
    %vm461 = vcmask 195584
    %v462 = vsel %vm461, %v460, %v456
    %v464 = vsel %vm185, %v107, 0
    %v467 = vsel %vm185, %v147, 0
    %469 = vmatpush.xpose.msra.mxu0 0.0
    %470 = vmatpush.xpose.msra.mxu0 0.0
    %471 = vmatpush.xpose.msra.mxu0 0.0
    %472 = vmatpush.xpose.msra.mxu0 0.0
    %473 = vmatpush.xpose.msra.mxu0 0.0
    %474 = vmatpush.xpose.msra.mxu0 0.0
    %475 = vmatpush.xpose.msra.mxu0 0.0
    %476 = vmatpush.xpose.msra.mxu0 0.0
    %477 = vmatpush.xpose.msra.mxu0 0.0
    %478 = vmatpush.xpose.msra.mxu0 0.0
    %479 = vmatpush.xpose.msra.mxu0 0.0
    %480 = vmatpush.xpose.msra.mxu0 0.0
    %481 = vmatpush.xpose.msra.mxu0 0.0
    %482 = vmatpush.xpose.msra.mxu0 0.0
    %483 = vmatpush.xpose.msra.mxu0 0.0
    %484 = vmatpush.xpose.msra.mxu0 %v467
    %485 = vmatmul.f32.gmra.mxu0 %v464
    %v486 = vpop.f32.mrf.mxu0
    %v487 = vadd.f32 0.0, %v486
    %488 = vdwg.mxu0
    %v489 = vmul.f32 %v487, 0.35355338
    %v490 = vsel %vm185, %v489, -inf
    %491 = vmax.xlane.f32.xlu0 %v490
    %v492 = vpop.xlane.xlu0 %491
    %v493 = vsub.f32 %v489, %v492
    %v494 = vmul.f32 %v493, 1.442695
    %v495 = vpow.pop %v494
    %v496 = vsel %vm185, %v495, 0.0
    %497 = vadd.xlane.f32.xlu0 %v496
    %v498 = vpop.xlane.xlu0 %497
    %v499 = vrcp.pop %v498
    %v500 = vmul.f32 %v495, %v499
    %v502 = vsel %vm185, %v500, 0
    %504 = vmatpush.msra.mxu0 0.0
    %505 = vmatpush.msra.mxu0 0.0
    %506 = vmatpush.msra.mxu0 0.0
    %507 = vmatpush.msra.mxu0 0.0
    %508 = vmatpush.msra.mxu0 0.0
    %509 = vmatpush.msra.mxu0 0.0
    %510 = vmatpush.msra.mxu0 0.0
    %511 = vmatpush.msra.mxu0 0.0
    %512 = vmatpush.msra.mxu0 0.0
    %513 = vmatpush.msra.mxu0 0.0
    %514 = vmatpush.msra.mxu0 0.0
    %515 = vmatpush.msra.mxu0 0.0
    %516 = vmatpush.msra.mxu0 0.0
    %517 = vmatpush.msra.mxu0 0.0
    %518 = vmatpush.msra.mxu0 0.0
    %519 = vmatpush.msra.mxu0 %v183
    %520 = vmatmul.f32.gmra.mxu0 %v502
    %v521 = vpop.f32.mrf.mxu0
    %v522 = vadd.f32 0.0, %v521
    %523 = vdwg.mxu0
    %524 = vrot.lane.b32.xlu0 %v107, 120
    %v525 = vpop.permute.xlu0 %524
    %526 = vrot.lane.b32.xlu0 %v147, 120
    %v527 = vpop.permute.xlu0 %526
    %v528 = vsel %vm185, %v525, 0
    %v530 = vsel %vm185, %v527, 0
    %532 = vmatpush.xpose.msra.mxu0 0.0
    %533 = vmatpush.xpose.msra.mxu0 0.0
    %534 = vmatpush.xpose.msra.mxu0 0.0
    %535 = vmatpush.xpose.msra.mxu0 0.0
    %536 = vmatpush.xpose.msra.mxu0 0.0
    %537 = vmatpush.xpose.msra.mxu0 0.0
    %538 = vmatpush.xpose.msra.mxu0 0.0
    %539 = vmatpush.xpose.msra.mxu0 0.0
    %540 = vmatpush.xpose.msra.mxu0 0.0
    %541 = vmatpush.xpose.msra.mxu0 0.0
    %542 = vmatpush.xpose.msra.mxu0 0.0
    %543 = vmatpush.xpose.msra.mxu0 0.0
    %544 = vmatpush.xpose.msra.mxu0 0.0
    %545 = vmatpush.xpose.msra.mxu0 0.0
    %546 = vmatpush.xpose.msra.mxu0 0.0
    %547 = vmatpush.xpose.msra.mxu0 %v530
    %548 = vmatmul.f32.gmra.mxu0 %v528
    %v549 = vpop.f32.mrf.mxu0
    %v550 = vadd.f32 0.0, %v549
    %551 = vdwg.mxu0
    %v552 = vmul.f32 %v550, 0.35355338
    %v553 = vsel %vm185, %v552, -inf
    %554 = vmax.xlane.f32.xlu0 %v553
    %v555 = vpop.xlane.xlu0 %554
    %v556 = vsub.f32 %v552, %v555
    %v557 = vmul.f32 %v556, 1.442695
    %v558 = vpow.pop %v557
    %v559 = vsel %vm185, %v558, 0.0
    %560 = vadd.xlane.f32.xlu0 %v559
    %v561 = vpop.xlane.xlu0 %560
    %v562 = vrcp.pop %v561
    %v563 = vmul.f32 %v558, %v562
    %565 = vrot.lane.b32.xlu0 %v183, 120
    %v566 = vpop.permute.xlu0 %565
    %v569 = vsel %vm185, %v563, 0
    %571 = vmatpush.msra.mxu0 0.0
    %572 = vmatpush.msra.mxu0 0.0
    %573 = vmatpush.msra.mxu0 0.0
    %574 = vmatpush.msra.mxu0 0.0
    %575 = vmatpush.msra.mxu0 0.0
    %576 = vmatpush.msra.mxu0 0.0
    %577 = vmatpush.msra.mxu0 0.0
    %578 = vmatpush.msra.mxu0 0.0
    %579 = vmatpush.msra.mxu0 0.0
    %580 = vmatpush.msra.mxu0 0.0
    %581 = vmatpush.msra.mxu0 0.0
    %582 = vmatpush.msra.mxu0 0.0
    %583 = vmatpush.msra.mxu0 0.0
    %584 = vmatpush.msra.mxu0 0.0
    %585 = vmatpush.msra.mxu0 0.0
    %586 = vmatpush.msra.mxu0 %v566
    %587 = vmatmul.f32.gmra.mxu0 %v569
    %v588 = vpop.f32.mrf.mxu0
    %v589 = vadd.f32 0.0, %v588
    %590 = vdwg.mxu0
    %591 = vrot.lane.b32.xlu0 %v107, 112
    %v592 = vpop.permute.xlu0 %591
    %593 = vrot.lane.b32.xlu0 %v147, 112
    %v594 = vpop.permute.xlu0 %593
    %v595 = vsel %vm185, %v592, 0
    %v597 = vsel %vm185, %v594, 0
    %599 = vmatpush.xpose.msra.mxu0 0.0
    %600 = vmatpush.xpose.msra.mxu0 0.0
    %601 = vmatpush.xpose.msra.mxu0 0.0
    %602 = vmatpush.xpose.msra.mxu0 0.0
    %603 = vmatpush.xpose.msra.mxu0 0.0
    %604 = vmatpush.xpose.msra.mxu0 0.0
    %605 = vmatpush.xpose.msra.mxu0 0.0
    %606 = vmatpush.xpose.msra.mxu0 0.0
    %607 = vmatpush.xpose.msra.mxu0 0.0
    %608 = vmatpush.xpose.msra.mxu0 0.0
    %609 = vmatpush.xpose.msra.mxu0 0.0
    %610 = vmatpush.xpose.msra.mxu0 0.0
    %611 = vmatpush.xpose.msra.mxu0 0.0
    %612 = vmatpush.xpose.msra.mxu0 0.0
    %613 = vmatpush.xpose.msra.mxu0 0.0
    %614 = vmatpush.xpose.msra.mxu0 %v597
    %615 = vmatmul.f32.gmra.mxu0 %v595
    %v616 = vpop.f32.mrf.mxu0
    %v617 = vadd.f32 0.0, %v616
    %618 = vdwg.mxu0
    %v619 = vmul.f32 %v617, 0.35355338
    %v620 = vsel %vm185, %v619, -inf
    %621 = vmax.xlane.f32.xlu0 %v620
    %v622 = vpop.xlane.xlu0 %621
    %v623 = vsub.f32 %v619, %v622
    %v624 = vmul.f32 %v623, 1.442695
    %v625 = vpow.pop %v624
    %v626 = vsel %vm185, %v625, 0.0
    %627 = vadd.xlane.f32.xlu0 %v626
    %v628 = vpop.xlane.xlu0 %627
    %v629 = vrcp.pop %v628
    %v630 = vmul.f32 %v625, %v629
    %631 = vrot.lane.b32.xlu0 %v183, 112
    %v632 = vpop.permute.xlu0 %631
    %v635 = vsel %vm185, %v630, 0
    %637 = vmatpush.msra.mxu0 0.0
    %638 = vmatpush.msra.mxu0 0.0
    %639 = vmatpush.msra.mxu0 0.0
    %640 = vmatpush.msra.mxu0 0.0
    %641 = vmatpush.msra.mxu0 0.0
    %642 = vmatpush.msra.mxu0 0.0
    %643 = vmatpush.msra.mxu0 0.0
    %644 = vmatpush.msra.mxu0 0.0
    %645 = vmatpush.msra.mxu0 0.0
    %646 = vmatpush.msra.mxu0 0.0
    %647 = vmatpush.msra.mxu0 0.0
    %648 = vmatpush.msra.mxu0 0.0
    %649 = vmatpush.msra.mxu0 0.0
    %650 = vmatpush.msra.mxu0 0.0
    %651 = vmatpush.msra.mxu0 0.0
    %652 = vmatpush.msra.mxu0 %v632
    %653 = vmatmul.f32.gmra.mxu0 %v635
    %v654 = vpop.f32.mrf.mxu0
    %v655 = vadd.f32 0.0, %v654
    %656 = vdwg.mxu0
    %657 = vrot.lane.b32.xlu0 %v107, 104
    %v658 = vpop.permute.xlu0 %657
    %659 = vrot.lane.b32.xlu0 %v147, 104
    %v660 = vpop.permute.xlu0 %659
    %v661 = vsel %vm185, %v658, 0
    %v663 = vsel %vm185, %v660, 0
    %665 = vmatpush.xpose.msra.mxu0 0.0
    %666 = vmatpush.xpose.msra.mxu0 0.0
    %667 = vmatpush.xpose.msra.mxu0 0.0
    %668 = vmatpush.xpose.msra.mxu0 0.0
    %669 = vmatpush.xpose.msra.mxu0 0.0
    %670 = vmatpush.xpose.msra.mxu0 0.0
    %671 = vmatpush.xpose.msra.mxu0 0.0
    %672 = vmatpush.xpose.msra.mxu0 0.0
    %673 = vmatpush.xpose.msra.mxu0 0.0
    %674 = vmatpush.xpose.msra.mxu0 0.0
    %675 = vmatpush.xpose.msra.mxu0 0.0
    %676 = vmatpush.xpose.msra.mxu0 0.0
    %677 = vmatpush.xpose.msra.mxu0 0.0
    %678 = vmatpush.xpose.msra.mxu0 0.0
    %679 = vmatpush.xpose.msra.mxu0 0.0
    %680 = vmatpush.xpose.msra.mxu0 %v663
    %681 = vmatmul.f32.gmra.mxu0 %v661
    %v682 = vpop.f32.mrf.mxu0
    %v683 = vadd.f32 0.0, %v682
    %684 = vdwg.mxu0
    %v685 = vmul.f32 %v683, 0.35355338
    %v686 = vsel %vm185, %v685, -inf
    %687 = vmax.xlane.f32.xlu0 %v686
    %v688 = vpop.xlane.xlu0 %687
    %v689 = vsub.f32 %v685, %v688
    %v690 = vmul.f32 %v689, 1.442695
    %v691 = vpow.pop %v690
    %v692 = vsel %vm185, %v691, 0.0
    %693 = vadd.xlane.f32.xlu0 %v692
    %v694 = vpop.xlane.xlu0 %693
    %v695 = vrcp.pop %v694
    %v696 = vmul.f32 %v691, %v695
    %697 = vrot.lane.b32.xlu0 %v183, 104
    %v698 = vpop.permute.xlu0 %697
    %v701 = vsel %vm185, %v696, 0
    %703 = vmatpush.msra.mxu0 0.0
    %704 = vmatpush.msra.mxu0 0.0
    %705 = vmatpush.msra.mxu0 0.0
    %706 = vmatpush.msra.mxu0 0.0
    %707 = vmatpush.msra.mxu0 0.0
    %708 = vmatpush.msra.mxu0 0.0
    %709 = vmatpush.msra.mxu0 0.0
    %710 = vmatpush.msra.mxu0 0.0
    %711 = vmatpush.msra.mxu0 0.0
    %712 = vmatpush.msra.mxu0 0.0
    %713 = vmatpush.msra.mxu0 0.0
    %714 = vmatpush.msra.mxu0 0.0
    %715 = vmatpush.msra.mxu0 0.0
    %716 = vmatpush.msra.mxu0 0.0
    %717 = vmatpush.msra.mxu0 0.0
    %718 = vmatpush.msra.mxu0 %v698
    %719 = vmatmul.f32.gmra.mxu0 %v701
    %v720 = vpop.f32.mrf.mxu0
    %v721 = vadd.f32 0.0, %v720
    %722 = vdwg.mxu0
    %724 = vrot.lane.b32.xlu0 %v589, 8
    %v725 = vpop.permute.xlu0 %724
    %728 = vrot.lane.b32.xlu0 %v655, 16
    %v729 = vpop.permute.xlu0 %728
    %732 = vrot.lane.b32.xlu0 %v721, 24
    %v733 = vpop.permute.xlu0 %732
    %v735 = vsel %vm185, %v522, %v725
    %v736 = vsel %vm459, %v735, %v729
    %v737 = vsel %vm461, %v736, %v733
    %v738 = vpack.c.bf16 %v737, %v462
    %s739 = scalar_lea.vmem [#allocation5], 48
    %v740 = vld [vmem:[%s739] sm:$0xf]
    %v741 = vld [vmem:[%s739 + $0x4] sm:$0xf]
    %v742 = vld [vmem:[%s739 + $0x8] sm:$0xf]
    %v743 = vld [vmem:[%s739 + $0xc] sm:$0xf]
    %s744 = scalar_lea.vmem [#allocation7], 3
    %v745 = vld [vmem:[%s744] sm:$0x1]
    %v747 = vperm.slane %v745, 0
    %v753 = vunpack.c.l.b16 %v740
    %v754 = vunpack.c.l.b16 %v741
    %v755 = vunpack.c.l.b16 %v742
    %v756 = vunpack.c.l.b16 %v743
    %v757 = vpack.c.b16 %v754, %v753
    %v758 = vpack.c.b16 %v756, %v755
    %v762 = vsel %vm91, %v738, 0
    %764 = vmatpush.bf16.msra.mxu0 0
    %765 = vmatpush.bf16.msra.mxu0 0
    %766 = vmatpush.bf16.msra.mxu0 0
    %767 = vmatpush.bf16.msra.mxu0 0
    %768 = vmatpush.bf16.msra.mxu0 0
    %769 = vmatpush.bf16.msra.mxu0 0
    %770 = vmatpush.bf16.msra.mxu0 %v758
    %771 = vmatpush.bf16.msra.mxu0 %v757
    %772 = vmatmul.bf16.gmra.mxu0 %v762
    %v773 = vpop.f32.mrf.mxu0
    %v774 = vadd.f32 %v747, %v773
    %v775 = vpop.f32.mrf.mxu0
    %v776 = vadd.f32 %v747, %v775
    %777 = vdwg.mxu0
    %v778 = vadd.f32 %v774, %v63
    %v779 = vadd.f32 %v776, %v64
    %v780 = vpack.c.bf16 %v779, %v778
    %s781 = scalar_lea.vmem [#allocation5], 64
    %v782 = vld [vmem:[%s781] sm:$0xf]
    %v783 = vld [vmem:[%s781 + $0x4] sm:$0xf]
    %v784 = vld [vmem:[%s781 + $0x8] sm:$0xf]
    %v785 = vld [vmem:[%s781 + $0xc] sm:$0xf]
    %v790 = vunpack.c.l.b16 %v782
    %v791 = vunpack.c.l.b16 %v783
    %v792 = vunpack.c.l.b16 %v784
    %v793 = vunpack.c.l.b16 %v785
    %v794 = vpack.c.b16 %v791, %v790
    %v795 = vpack.c.b16 %v793, %v792
    %v799 = vsel %vm91, %v780, 0
    %801 = vmatpush.bf16.msra.mxu0 0
    %802 = vmatpush.bf16.msra.mxu0 0
    %803 = vmatpush.bf16.msra.mxu0 0
    %804 = vmatpush.bf16.msra.mxu0 0
    %805 = vmatpush.bf16.msra.mxu0 0
    %806 = vmatpush.bf16.msra.mxu0 0
    %807 = vmatpush.bf16.msra.mxu0 %v795
    %808 = vmatpush.bf16.msra.mxu0 %v794
    %809 = vmatmul.bf16.gmra.mxu0 %v799
    %v810 = vpop.f32.mrf.mxu0
    %v811 = vadd.f32 %v778, %v810
    %v812 = vpop.f32.mrf.mxu0
    %v813 = vadd.f32 %v779, %v812
    %814 = vdwg.mxu0
    %v815 = vadd.f32 %v811, %v66
    %v816 = vadd.f32 %v813, %v67
    %v817 = vpack.c.bf16 %v813, %v811
    %s818 = scalar_lea.vmem [#allocation5], 80
    %v819 = vld [vmem:[%s818] sm:$0xf]
    %v820 = vld [vmem:[%s818 + $0x4] sm:$0xf]
    %v821 = vld [vmem:[%s818 + $0x8] sm:$0xf]
    %v822 = vld [vmem:[%s818 + $0xc] sm:$0xf]
    %s823 = scalar_lea.vmem [#allocation7], 4
    %v824 = vld [vmem:[%s823] sm:$0x1]
    %v826 = vperm.slane %v824, 0
    %v832 = vunpack.c.l.b16 %v819
    %v833 = vunpack.c.l.b16 %v820
    %v834 = vunpack.c.l.b16 %v821
    %v835 = vunpack.c.l.b16 %v822
    %v836 = vpack.c.b16 %v833, %v832
    %v837 = vpack.c.b16 %v835, %v834
    %v841 = vsel %vm91, %v817, 0
    %843 = vmatpush.bf16.msra.mxu0 0
    %844 = vmatpush.bf16.msra.mxu0 0
    %845 = vmatpush.bf16.msra.mxu0 0
    %846 = vmatpush.bf16.msra.mxu0 0
    %847 = vmatpush.bf16.msra.mxu0 0
    %848 = vmatpush.bf16.msra.mxu0 0
    %849 = vmatpush.bf16.msra.mxu0 %v837
    %850 = vmatpush.bf16.msra.mxu0 %v836
    %851 = vmatmul.bf16.gmra.mxu0 %v841
    %v852 = vpop.f32.mrf.mxu0
    %v853 = vadd.f32 %v826, %v852
    %v854 = vpop.f32.mrf.mxu0
    %v855 = vadd.f32 %v826, %v854
    %856 = vdwg.mxu0
    %v857 = vpack.c.bf16 %v816, %v815
    %s858 = scalar_lea.vmem [#allocation5], 96
    %v859 = vld [vmem:[%s858] sm:$0xf]
    %v860 = vld [vmem:[%s858 + $0x4] sm:$0xf]
    %v861 = vld [vmem:[%s858 + $0x8] sm:$0xf]
    %v862 = vld [vmem:[%s858 + $0xc] sm:$0xf]
    %s863 = scalar_lea.vmem [#allocation7], 5
    %v864 = vld [vmem:[%s863] sm:$0x1]
    %v866 = vperm.slane %v864, 0
    %v872 = vunpack.c.l.b16 %v859
    %v873 = vunpack.c.l.b16 %v860
    %v874 = vunpack.c.l.b16 %v861
    %v875 = vunpack.c.l.b16 %v862
    %v876 = vpack.c.b16 %v873, %v872
    %v877 = vpack.c.b16 %v875, %v874
    %v881 = vsel %vm91, %v857, 0
    %883 = vmatpush.bf16.msra.mxu0 0
    %884 = vmatpush.bf16.msra.mxu0 0
    %885 = vmatpush.bf16.msra.mxu0 0
    %886 = vmatpush.bf16.msra.mxu0 0
    %887 = vmatpush.bf16.msra.mxu0 0
    %888 = vmatpush.bf16.msra.mxu0 0
    %889 = vmatpush.bf16.msra.mxu0 %v877
    %890 = vmatpush.bf16.msra.mxu0 %v876
    %891 = vmatmul.bf16.gmra.mxu0 %v881
    %v892 = vpop.f32.mrf.mxu0
    %v893 = vadd.f32 %v866, %v892
    %v894 = vpop.f32.mrf.mxu0
    %v895 = vadd.f32 %v866, %v894
    %896 = vdwg.mxu0
    %s897 = scalar_lea.vmem [#allocation5], 112
    %v898 = vld [vmem:[%s897] sm:$0xf]
    %v899 = vld [vmem:[%s897 + $0x4] sm:$0xf]
    %v900 = vld [vmem:[%s897 + $0x8] sm:$0xf]
    %v901 = vld [vmem:[%s897 + $0xc] sm:$0xf]
    %s902 = scalar_lea.vmem [#allocation7], 6
    %v903 = vld [vmem:[%s902] sm:$0x1]
    %v905 = vperm.slane %v903, 0
    %v911 = vunpack.c.l.b16 %v898
    %v912 = vunpack.c.l.b16 %v899
    %v913 = vunpack.c.l.b16 %v900
    %v914 = vunpack.c.l.b16 %v901
    %v915 = vpack.c.b16 %v912, %v911
    %v916 = vpack.c.b16 %v914, %v913
    %919 = vmatpush.bf16.msra.mxu0 0
    %920 = vmatpush.bf16.msra.mxu0 0
    %921 = vmatpush.bf16.msra.mxu0 0
    %922 = vmatpush.bf16.msra.mxu0 0
    %923 = vmatpush.bf16.msra.mxu0 0
    %924 = vmatpush.bf16.msra.mxu0 0
    %925 = vmatpush.bf16.msra.mxu0 %v916
    %926 = vmatpush.bf16.msra.mxu0 %v915
    %927 = vmatmul.bf16.gmra.mxu0 %v881
    %v928 = vpop.f32.mrf.mxu0
    %v929 = vadd.f32 %v905, %v928
    %v930 = vpop.f32.mrf.mxu0
    %v931 = vadd.f32 %v905, %v930
    %932 = vdwg.mxu0
    %v934 = vsel %vm185, %v853, 0
    %v937 = vsel %vm185, %v893, 0
    %939 = vmatpush.xpose.msra.mxu0 0.0
    %940 = vmatpush.xpose.msra.mxu0 0.0
    %941 = vmatpush.xpose.msra.mxu0 0.0
    %942 = vmatpush.xpose.msra.mxu0 0.0
    %943 = vmatpush.xpose.msra.mxu0 0.0
    %944 = vmatpush.xpose.msra.mxu0 0.0
    %945 = vmatpush.xpose.msra.mxu0 0.0
    %946 = vmatpush.xpose.msra.mxu0 0.0
    %947 = vmatpush.xpose.msra.mxu0 0.0
    %948 = vmatpush.xpose.msra.mxu0 0.0
    %949 = vmatpush.xpose.msra.mxu0 0.0
    %950 = vmatpush.xpose.msra.mxu0 0.0
    %951 = vmatpush.xpose.msra.mxu0 0.0
    %952 = vmatpush.xpose.msra.mxu0 0.0
    %953 = vmatpush.xpose.msra.mxu0 0.0
    %954 = vmatpush.xpose.msra.mxu0 %v937
    %955 = vmatmul.f32.gmra.mxu0 %v934
    %v956 = vpop.f32.mrf.mxu0
    %v957 = vadd.f32 0.0, %v956
    %958 = vdwg.mxu0
    %v959 = vmul.f32 %v957, 0.35355338
    %v960 = vsel %vm185, %v959, -inf
    %961 = vmax.xlane.f32.xlu0 %v960
    %v962 = vpop.xlane.xlu0 %961
    %v963 = vsub.f32 %v959, %v962
    %v964 = vmul.f32 %v963, 1.442695
    %v965 = vpow.pop %v964
    %v966 = vsel %vm185, %v965, 0.0
    %967 = vadd.xlane.f32.xlu0 %v966
    %v968 = vpop.xlane.xlu0 %967
    %v969 = vrcp.pop %v968
    %v970 = vmul.f32 %v965, %v969
    %v972 = vsel %vm185, %v970, 0
    %974 = vmatpush.msra.mxu0 0.0
    %975 = vmatpush.msra.mxu0 0.0
    %976 = vmatpush.msra.mxu0 0.0
    %977 = vmatpush.msra.mxu0 0.0
    %978 = vmatpush.msra.mxu0 0.0
    %979 = vmatpush.msra.mxu0 0.0
    %980 = vmatpush.msra.mxu0 0.0
    %981 = vmatpush.msra.mxu0 0.0
    %982 = vmatpush.msra.mxu0 0.0
    %983 = vmatpush.msra.mxu0 0.0
    %984 = vmatpush.msra.mxu0 0.0
    %985 = vmatpush.msra.mxu0 0.0
    %986 = vmatpush.msra.mxu0 0.0
    %987 = vmatpush.msra.mxu0 0.0
    %988 = vmatpush.msra.mxu0 0.0
    %989 = vmatpush.msra.mxu0 %v929
    %990 = vmatmul.f32.gmra.mxu0 %v972
    %v991 = vpop.f32.mrf.mxu0
    %v992 = vadd.f32 0.0, %v991
    %993 = vdwg.mxu0
    %994 = vrot.lane.b32.xlu0 %v853, 120
    %v995 = vpop.permute.xlu0 %994
    %996 = vrot.lane.b32.xlu0 %v893, 120
    %v997 = vpop.permute.xlu0 %996
    %v998 = vsel %vm185, %v995, 0
    %v1000 = vsel %vm185, %v997, 0
    %1002 = vmatpush.xpose.msra.mxu0 0.0
    %1003 = vmatpush.xpose.msra.mxu0 0.0
    %1004 = vmatpush.xpose.msra.mxu0 0.0
    %1005 = vmatpush.xpose.msra.mxu0 0.0
    %1006 = vmatpush.xpose.msra.mxu0 0.0
    %1007 = vmatpush.xpose.msra.mxu0 0.0
    %1008 = vmatpush.xpose.msra.mxu0 0.0
    %1009 = vmatpush.xpose.msra.mxu0 0.0
    %1010 = vmatpush.xpose.msra.mxu0 0.0
    %1011 = vmatpush.xpose.msra.mxu0 0.0
    %1012 = vmatpush.xpose.msra.mxu0 0.0
    %1013 = vmatpush.xpose.msra.mxu0 0.0
    %1014 = vmatpush.xpose.msra.mxu0 0.0
    %1015 = vmatpush.xpose.msra.mxu0 0.0
    %1016 = vmatpush.xpose.msra.mxu0 0.0
    %1017 = vmatpush.xpose.msra.mxu0 %v1000
    %1018 = vmatmul.f32.gmra.mxu0 %v998
    %v1019 = vpop.f32.mrf.mxu0
    %v1020 = vadd.f32 0.0, %v1019
    %1021 = vdwg.mxu0
    %v1022 = vmul.f32 %v1020, 0.35355338
    %v1023 = vsel %vm185, %v1022, -inf
    %1024 = vmax.xlane.f32.xlu0 %v1023
    %v1025 = vpop.xlane.xlu0 %1024
    %v1026 = vsub.f32 %v1022, %v1025
    %v1027 = vmul.f32 %v1026, 1.442695
    %v1028 = vpow.pop %v1027
    %v1029 = vsel %vm185, %v1028, 0.0
    %1030 = vadd.xlane.f32.xlu0 %v1029
    %v1031 = vpop.xlane.xlu0 %1030
    %v1032 = vrcp.pop %v1031
    %v1033 = vmul.f32 %v1028, %v1032
    %1035 = vrot.lane.b32.xlu0 %v929, 120
    %v1036 = vpop.permute.xlu0 %1035
    %v1039 = vsel %vm185, %v1033, 0
    %1041 = vmatpush.msra.mxu0 0.0
    %1042 = vmatpush.msra.mxu0 0.0
    %1043 = vmatpush.msra.mxu0 0.0
    %1044 = vmatpush.msra.mxu0 0.0
    %1045 = vmatpush.msra.mxu0 0.0
    %1046 = vmatpush.msra.mxu0 0.0
    %1047 = vmatpush.msra.mxu0 0.0
    %1048 = vmatpush.msra.mxu0 0.0
    %1049 = vmatpush.msra.mxu0 0.0
    %1050 = vmatpush.msra.mxu0 0.0
    %1051 = vmatpush.msra.mxu0 0.0
    %1052 = vmatpush.msra.mxu0 0.0
    %1053 = vmatpush.msra.mxu0 0.0
    %1054 = vmatpush.msra.mxu0 0.0
    %1055 = vmatpush.msra.mxu0 0.0
    %1056 = vmatpush.msra.mxu0 %v1036
    %1057 = vmatmul.f32.gmra.mxu0 %v1039
    %v1058 = vpop.f32.mrf.mxu0
    %v1059 = vadd.f32 0.0, %v1058
    %1060 = vdwg.mxu0
    %1061 = vrot.lane.b32.xlu0 %v853, 112
    %v1062 = vpop.permute.xlu0 %1061
    %1063 = vrot.lane.b32.xlu0 %v893, 112
    %v1064 = vpop.permute.xlu0 %1063
    %v1065 = vsel %vm185, %v1062, 0
    %v1067 = vsel %vm185, %v1064, 0
    %1069 = vmatpush.xpose.msra.mxu0 0.0
    %1070 = vmatpush.xpose.msra.mxu0 0.0
    %1071 = vmatpush.xpose.msra.mxu0 0.0
    %1072 = vmatpush.xpose.msra.mxu0 0.0
    %1073 = vmatpush.xpose.msra.mxu0 0.0
    %1074 = vmatpush.xpose.msra.mxu0 0.0
    %1075 = vmatpush.xpose.msra.mxu0 0.0
    %1076 = vmatpush.xpose.msra.mxu0 0.0
    %1077 = vmatpush.xpose.msra.mxu0 0.0
    %1078 = vmatpush.xpose.msra.mxu0 0.0
    %1079 = vmatpush.xpose.msra.mxu0 0.0
    %1080 = vmatpush.xpose.msra.mxu0 0.0
    %1081 = vmatpush.xpose.msra.mxu0 0.0
    %1082 = vmatpush.xpose.msra.mxu0 0.0
    %1083 = vmatpush.xpose.msra.mxu0 0.0
    %1084 = vmatpush.xpose.msra.mxu0 %v1067
    %1085 = vmatmul.f32.gmra.mxu0 %v1065
    %v1086 = vpop.f32.mrf.mxu0
    %v1087 = vadd.f32 0.0, %v1086
    %1088 = vdwg.mxu0
    %v1089 = vmul.f32 %v1087, 0.35355338
    %v1090 = vsel %vm185, %v1089, -inf
    %1091 = vmax.xlane.f32.xlu0 %v1090
    %v1092 = vpop.xlane.xlu0 %1091
    %v1093 = vsub.f32 %v1089, %v1092
    %v1094 = vmul.f32 %v1093, 1.442695
    %v1095 = vpow.pop %v1094
    %v1096 = vsel %vm185, %v1095, 0.0
    %1097 = vadd.xlane.f32.xlu0 %v1096
    %v1098 = vpop.xlane.xlu0 %1097
    %v1099 = vrcp.pop %v1098
    %v1100 = vmul.f32 %v1095, %v1099
    %1101 = vrot.lane.b32.xlu0 %v929, 112
    %v1102 = vpop.permute.xlu0 %1101
    %v1105 = vsel %vm185, %v1100, 0
    %1107 = vmatpush.msra.mxu0 0.0
    %1108 = vmatpush.msra.mxu0 0.0
    %1109 = vmatpush.msra.mxu0 0.0
    %1110 = vmatpush.msra.mxu0 0.0
    %1111 = vmatpush.msra.mxu0 0.0
    %1112 = vmatpush.msra.mxu0 0.0
    %1113 = vmatpush.msra.mxu0 0.0
    %1114 = vmatpush.msra.mxu0 0.0
    %1115 = vmatpush.msra.mxu0 0.0
    %1116 = vmatpush.msra.mxu0 0.0
    %1117 = vmatpush.msra.mxu0 0.0
    %1118 = vmatpush.msra.mxu0 0.0
    %1119 = vmatpush.msra.mxu0 0.0
    %1120 = vmatpush.msra.mxu0 0.0
    %1121 = vmatpush.msra.mxu0 0.0
    %1122 = vmatpush.msra.mxu0 %v1102
    %1123 = vmatmul.f32.gmra.mxu0 %v1105
    %v1124 = vpop.f32.mrf.mxu0
    %v1125 = vadd.f32 0.0, %v1124
    %1126 = vdwg.mxu0
    %1127 = vrot.lane.b32.xlu0 %v853, 104
    %v1128 = vpop.permute.xlu0 %1127
    %1129 = vrot.lane.b32.xlu0 %v893, 104
    %v1130 = vpop.permute.xlu0 %1129
    %v1131 = vsel %vm185, %v1128, 0
    %v1133 = vsel %vm185, %v1130, 0
    %1135 = vmatpush.xpose.msra.mxu0 0.0
    %1136 = vmatpush.xpose.msra.mxu0 0.0
    %1137 = vmatpush.xpose.msra.mxu0 0.0
    %1138 = vmatpush.xpose.msra.mxu0 0.0
    %1139 = vmatpush.xpose.msra.mxu0 0.0
    %1140 = vmatpush.xpose.msra.mxu0 0.0
    %1141 = vmatpush.xpose.msra.mxu0 0.0
    %1142 = vmatpush.xpose.msra.mxu0 0.0
    %1143 = vmatpush.xpose.msra.mxu0 0.0
    %1144 = vmatpush.xpose.msra.mxu0 0.0
    %1145 = vmatpush.xpose.msra.mxu0 0.0
    %1146 = vmatpush.xpose.msra.mxu0 0.0
    %1147 = vmatpush.xpose.msra.mxu0 0.0
    %1148 = vmatpush.xpose.msra.mxu0 0.0
    %1149 = vmatpush.xpose.msra.mxu0 0.0
    %1150 = vmatpush.xpose.msra.mxu0 %v1133
    %1151 = vmatmul.f32.gmra.mxu0 %v1131
    %v1152 = vpop.f32.mrf.mxu0
    %v1153 = vadd.f32 0.0, %v1152
    %1154 = vdwg.mxu0
    %v1155 = vmul.f32 %v1153, 0.35355338
    %v1156 = vsel %vm185, %v1155, -inf
    %1157 = vmax.xlane.f32.xlu0 %v1156
    %v1158 = vpop.xlane.xlu0 %1157
    %v1159 = vsub.f32 %v1155, %v1158
    %v1160 = vmul.f32 %v1159, 1.442695
    %v1161 = vpow.pop %v1160
    %v1162 = vsel %vm185, %v1161, 0.0
    %1163 = vadd.xlane.f32.xlu0 %v1162
    %v1164 = vpop.xlane.xlu0 %1163
    %v1165 = vrcp.pop %v1164
    %v1166 = vmul.f32 %v1161, %v1165
    %1167 = vrot.lane.b32.xlu0 %v929, 104
    %v1168 = vpop.permute.xlu0 %1167
    %v1171 = vsel %vm185, %v1166, 0
    %1173 = vmatpush.msra.mxu0 0.0
    %1174 = vmatpush.msra.mxu0 0.0
    %1175 = vmatpush.msra.mxu0 0.0
    %1176 = vmatpush.msra.mxu0 0.0
    %1177 = vmatpush.msra.mxu0 0.0
    %1178 = vmatpush.msra.mxu0 0.0
    %1179 = vmatpush.msra.mxu0 0.0
    %1180 = vmatpush.msra.mxu0 0.0
    %1181 = vmatpush.msra.mxu0 0.0
    %1182 = vmatpush.msra.mxu0 0.0
    %1183 = vmatpush.msra.mxu0 0.0
    %1184 = vmatpush.msra.mxu0 0.0
    %1185 = vmatpush.msra.mxu0 0.0
    %1186 = vmatpush.msra.mxu0 0.0
    %1187 = vmatpush.msra.mxu0 0.0
    %1188 = vmatpush.msra.mxu0 %v1168
    %1189 = vmatmul.f32.gmra.mxu0 %v1171
    %v1190 = vpop.f32.mrf.mxu0
    %v1191 = vadd.f32 0.0, %v1190
    %1192 = vdwg.mxu0
    %1194 = vrot.lane.b32.xlu0 %v1059, 8
    %v1195 = vpop.permute.xlu0 %1194
    %1198 = vrot.lane.b32.xlu0 %v1125, 16
    %v1199 = vpop.permute.xlu0 %1198
    %1202 = vrot.lane.b32.xlu0 %v1191, 24
    %v1203 = vpop.permute.xlu0 %1202
    %v1205 = vsel %vm185, %v992, %v1195
    %v1206 = vsel %vm459, %v1205, %v1199
    %v1207 = vsel %vm461, %v1206, %v1203
    %v1209 = vsel %vm185, %v855, 0
    %v1212 = vsel %vm185, %v895, 0
    %1214 = vmatpush.xpose.msra.mxu0 0.0
    %1215 = vmatpush.xpose.msra.mxu0 0.0
    %1216 = vmatpush.xpose.msra.mxu0 0.0
    %1217 = vmatpush.xpose.msra.mxu0 0.0
    %1218 = vmatpush.xpose.msra.mxu0 0.0
    %1219 = vmatpush.xpose.msra.mxu0 0.0
    %1220 = vmatpush.xpose.msra.mxu0 0.0
    %1221 = vmatpush.xpose.msra.mxu0 0.0
    %1222 = vmatpush.xpose.msra.mxu0 0.0
    %1223 = vmatpush.xpose.msra.mxu0 0.0
    %1224 = vmatpush.xpose.msra.mxu0 0.0
    %1225 = vmatpush.xpose.msra.mxu0 0.0
    %1226 = vmatpush.xpose.msra.mxu0 0.0
    %1227 = vmatpush.xpose.msra.mxu0 0.0
    %1228 = vmatpush.xpose.msra.mxu0 0.0
    %1229 = vmatpush.xpose.msra.mxu0 %v1212
    %1230 = vmatmul.f32.gmra.mxu0 %v1209
    %v1231 = vpop.f32.mrf.mxu0
    %v1232 = vadd.f32 0.0, %v1231
    %1233 = vdwg.mxu0
    %v1234 = vmul.f32 %v1232, 0.35355338
    %v1235 = vsel %vm185, %v1234, -inf
    %1236 = vmax.xlane.f32.xlu0 %v1235
    %v1237 = vpop.xlane.xlu0 %1236
    %v1238 = vsub.f32 %v1234, %v1237
    %v1239 = vmul.f32 %v1238, 1.442695
    %v1240 = vpow.pop %v1239
    %v1241 = vsel %vm185, %v1240, 0.0
    %1242 = vadd.xlane.f32.xlu0 %v1241
    %v1243 = vpop.xlane.xlu0 %1242
    %v1244 = vrcp.pop %v1243
    %v1245 = vmul.f32 %v1240, %v1244
    %v1247 = vsel %vm185, %v1245, 0
    %1249 = vmatpush.msra.mxu0 0.0
    %1250 = vmatpush.msra.mxu0 0.0
    %1251 = vmatpush.msra.mxu0 0.0
    %1252 = vmatpush.msra.mxu0 0.0
    %1253 = vmatpush.msra.mxu0 0.0
    %1254 = vmatpush.msra.mxu0 0.0
    %1255 = vmatpush.msra.mxu0 0.0
    %1256 = vmatpush.msra.mxu0 0.0
    %1257 = vmatpush.msra.mxu0 0.0
    %1258 = vmatpush.msra.mxu0 0.0
    %1259 = vmatpush.msra.mxu0 0.0
    %1260 = vmatpush.msra.mxu0 0.0
    %1261 = vmatpush.msra.mxu0 0.0
    %1262 = vmatpush.msra.mxu0 0.0
    %1263 = vmatpush.msra.mxu0 0.0
    %1264 = vmatpush.msra.mxu0 %v931
    %1265 = vmatmul.f32.gmra.mxu0 %v1247
    %v1266 = vpop.f32.mrf.mxu0
    %v1267 = vadd.f32 0.0, %v1266
    %1268 = vdwg.mxu0
    %1269 = vrot.lane.b32.xlu0 %v855, 120
    %v1270 = vpop.permute.xlu0 %1269
    %1271 = vrot.lane.b32.xlu0 %v895, 120
    %v1272 = vpop.permute.xlu0 %1271
    %v1273 = vsel %vm185, %v1270, 0
    %v1275 = vsel %vm185, %v1272, 0
    %1277 = vmatpush.xpose.msra.mxu0 0.0
    %1278 = vmatpush.xpose.msra.mxu0 0.0
    %1279 = vmatpush.xpose.msra.mxu0 0.0
    %1280 = vmatpush.xpose.msra.mxu0 0.0
    %1281 = vmatpush.xpose.msra.mxu0 0.0
    %1282 = vmatpush.xpose.msra.mxu0 0.0
    %1283 = vmatpush.xpose.msra.mxu0 0.0
    %1284 = vmatpush.xpose.msra.mxu0 0.0
    %1285 = vmatpush.xpose.msra.mxu0 0.0
    %1286 = vmatpush.xpose.msra.mxu0 0.0
    %1287 = vmatpush.xpose.msra.mxu0 0.0
    %1288 = vmatpush.xpose.msra.mxu0 0.0
    %1289 = vmatpush.xpose.msra.mxu0 0.0
    %1290 = vmatpush.xpose.msra.mxu0 0.0
    %1291 = vmatpush.xpose.msra.mxu0 0.0
    %1292 = vmatpush.xpose.msra.mxu0 %v1275
    %1293 = vmatmul.f32.gmra.mxu0 %v1273
    %v1294 = vpop.f32.mrf.mxu0
    %v1295 = vadd.f32 0.0, %v1294
    %1296 = vdwg.mxu0
    %v1297 = vmul.f32 %v1295, 0.35355338
    %v1298 = vsel %vm185, %v1297, -inf
    %1299 = vmax.xlane.f32.xlu0 %v1298
    %v1300 = vpop.xlane.xlu0 %1299
    %v1301 = vsub.f32 %v1297, %v1300
    %v1302 = vmul.f32 %v1301, 1.442695
    %v1303 = vpow.pop %v1302
    %v1304 = vsel %vm185, %v1303, 0.0
    %1305 = vadd.xlane.f32.xlu0 %v1304
    %v1306 = vpop.xlane.xlu0 %1305
    %v1307 = vrcp.pop %v1306
    %v1308 = vmul.f32 %v1303, %v1307
    %1310 = vrot.lane.b32.xlu0 %v931, 120
    %v1311 = vpop.permute.xlu0 %1310
    %v1314 = vsel %vm185, %v1308, 0
    %1316 = vmatpush.msra.mxu0 0.0
    %1317 = vmatpush.msra.mxu0 0.0
    %1318 = vmatpush.msra.mxu0 0.0
    %1319 = vmatpush.msra.mxu0 0.0
    %1320 = vmatpush.msra.mxu0 0.0
    %1321 = vmatpush.msra.mxu0 0.0
    %1322 = vmatpush.msra.mxu0 0.0
    %1323 = vmatpush.msra.mxu0 0.0
    %1324 = vmatpush.msra.mxu0 0.0
    %1325 = vmatpush.msra.mxu0 0.0
    %1326 = vmatpush.msra.mxu0 0.0
    %1327 = vmatpush.msra.mxu0 0.0
    %1328 = vmatpush.msra.mxu0 0.0
    %1329 = vmatpush.msra.mxu0 0.0
    %1330 = vmatpush.msra.mxu0 0.0
    %1331 = vmatpush.msra.mxu0 %v1311
    %1332 = vmatmul.f32.gmra.mxu0 %v1314
    %v1333 = vpop.f32.mrf.mxu0
    %v1334 = vadd.f32 0.0, %v1333
    %1335 = vdwg.mxu0
    %1336 = vrot.lane.b32.xlu0 %v855, 112
    %v1337 = vpop.permute.xlu0 %1336
    %1338 = vrot.lane.b32.xlu0 %v895, 112
    %v1339 = vpop.permute.xlu0 %1338
    %v1340 = vsel %vm185, %v1337, 0
    %v1342 = vsel %vm185, %v1339, 0
    %1344 = vmatpush.xpose.msra.mxu0 0.0
    %1345 = vmatpush.xpose.msra.mxu0 0.0
    %1346 = vmatpush.xpose.msra.mxu0 0.0
    %1347 = vmatpush.xpose.msra.mxu0 0.0
    %1348 = vmatpush.xpose.msra.mxu0 0.0
    %1349 = vmatpush.xpose.msra.mxu0 0.0
    %1350 = vmatpush.xpose.msra.mxu0 0.0
    %1351 = vmatpush.xpose.msra.mxu0 0.0
    %1352 = vmatpush.xpose.msra.mxu0 0.0
    %1353 = vmatpush.xpose.msra.mxu0 0.0
    %1354 = vmatpush.xpose.msra.mxu0 0.0
    %1355 = vmatpush.xpose.msra.mxu0 0.0
    %1356 = vmatpush.xpose.msra.mxu0 0.0
    %1357 = vmatpush.xpose.msra.mxu0 0.0
    %1358 = vmatpush.xpose.msra.mxu0 0.0
    %1359 = vmatpush.xpose.msra.mxu0 %v1342
    %1360 = vmatmul.f32.gmra.mxu0 %v1340
    %v1361 = vpop.f32.mrf.mxu0
    %v1362 = vadd.f32 0.0, %v1361
    %1363 = vdwg.mxu0
    %v1364 = vmul.f32 %v1362, 0.35355338
    %v1365 = vsel %vm185, %v1364, -inf
    %1366 = vmax.xlane.f32.xlu0 %v1365
    %v1367 = vpop.xlane.xlu0 %1366
    %v1368 = vsub.f32 %v1364, %v1367
    %v1369 = vmul.f32 %v1368, 1.442695
    %v1370 = vpow.pop %v1369
    %v1371 = vsel %vm185, %v1370, 0.0
    %1372 = vadd.xlane.f32.xlu0 %v1371
    %v1373 = vpop.xlane.xlu0 %1372
    %v1374 = vrcp.pop %v1373
    %v1375 = vmul.f32 %v1370, %v1374
    %1376 = vrot.lane.b32.xlu0 %v931, 112
    %v1377 = vpop.permute.xlu0 %1376
    %v1380 = vsel %vm185, %v1375, 0
    %1382 = vmatpush.msra.mxu0 0.0
    %1383 = vmatpush.msra.mxu0 0.0
    %1384 = vmatpush.msra.mxu0 0.0
    %1385 = vmatpush.msra.mxu0 0.0
    %1386 = vmatpush.msra.mxu0 0.0
    %1387 = vmatpush.msra.mxu0 0.0
    %1388 = vmatpush.msra.mxu0 0.0
    %1389 = vmatpush.msra.mxu0 0.0
    %1390 = vmatpush.msra.mxu0 0.0
    %1391 = vmatpush.msra.mxu0 0.0
    %1392 = vmatpush.msra.mxu0 0.0
    %1393 = vmatpush.msra.mxu0 0.0
    %1394 = vmatpush.msra.mxu0 0.0
    %1395 = vmatpush.msra.mxu0 0.0
    %1396 = vmatpush.msra.mxu0 0.0
    %1397 = vmatpush.msra.mxu0 %v1377
    %1398 = vmatmul.f32.gmra.mxu0 %v1380
    %v1399 = vpop.f32.mrf.mxu0
    %v1400 = vadd.f32 0.0, %v1399
    %1401 = vdwg.mxu0
    %1402 = vrot.lane.b32.xlu0 %v855, 104
    %v1403 = vpop.permute.xlu0 %1402
    %1404 = vrot.lane.b32.xlu0 %v895, 104
    %v1405 = vpop.permute.xlu0 %1404
    %v1406 = vsel %vm185, %v1403, 0
    %v1408 = vsel %vm185, %v1405, 0
    %1410 = vmatpush.xpose.msra.mxu0 0.0
    %1411 = vmatpush.xpose.msra.mxu0 0.0
    %1412 = vmatpush.xpose.msra.mxu0 0.0
    %1413 = vmatpush.xpose.msra.mxu0 0.0
    %1414 = vmatpush.xpose.msra.mxu0 0.0
    %1415 = vmatpush.xpose.msra.mxu0 0.0
    %1416 = vmatpush.xpose.msra.mxu0 0.0
    %1417 = vmatpush.xpose.msra.mxu0 0.0
    %1418 = vmatpush.xpose.msra.mxu0 0.0
    %1419 = vmatpush.xpose.msra.mxu0 0.0
    %1420 = vmatpush.xpose.msra.mxu0 0.0
    %1421 = vmatpush.xpose.msra.mxu0 0.0
    %1422 = vmatpush.xpose.msra.mxu0 0.0
    %1423 = vmatpush.xpose.msra.mxu0 0.0
    %1424 = vmatpush.xpose.msra.mxu0 0.0
    %1425 = vmatpush.xpose.msra.mxu0 %v1408
    %1426 = vmatmul.f32.gmra.mxu0 %v1406
    %v1427 = vpop.f32.mrf.mxu0
    %v1428 = vadd.f32 0.0, %v1427
    %1429 = vdwg.mxu0
    %v1430 = vmul.f32 %v1428, 0.35355338
    %v1431 = vsel %vm185, %v1430, -inf
    %1432 = vmax.xlane.f32.xlu0 %v1431
    %v1433 = vpop.xlane.xlu0 %1432
    %v1434 = vsub.f32 %v1430, %v1433
    %v1435 = vmul.f32 %v1434, 1.442695
    %v1436 = vpow.pop %v1435
    %v1437 = vsel %vm185, %v1436, 0.0
    %1438 = vadd.xlane.f32.xlu0 %v1437
    %v1439 = vpop.xlane.xlu0 %1438
    %v1440 = vrcp.pop %v1439
    %v1441 = vmul.f32 %v1436, %v1440
    %1442 = vrot.lane.b32.xlu0 %v931, 104
    %v1443 = vpop.permute.xlu0 %1442
    %v1446 = vsel %vm185, %v1441, 0
    %1448 = vmatpush.msra.mxu0 0.0
    %1449 = vmatpush.msra.mxu0 0.0
    %1450 = vmatpush.msra.mxu0 0.0
    %1451 = vmatpush.msra.mxu0 0.0
    %1452 = vmatpush.msra.mxu0 0.0
    %1453 = vmatpush.msra.mxu0 0.0
    %1454 = vmatpush.msra.mxu0 0.0
    %1455 = vmatpush.msra.mxu0 0.0
    %1456 = vmatpush.msra.mxu0 0.0
    %1457 = vmatpush.msra.mxu0 0.0
    %1458 = vmatpush.msra.mxu0 0.0
    %1459 = vmatpush.msra.mxu0 0.0
    %1460 = vmatpush.msra.mxu0 0.0
    %1461 = vmatpush.msra.mxu0 0.0
    %1462 = vmatpush.msra.mxu0 0.0
    %1463 = vmatpush.msra.mxu0 %v1443
    %1464 = vmatmul.f32.gmra.mxu0 %v1446
    %v1465 = vpop.f32.mrf.mxu0
    %v1466 = vadd.f32 0.0, %v1465
    %1467 = vdwg.mxu0
    %1469 = vrot.lane.b32.xlu0 %v1334, 8
    %v1470 = vpop.permute.xlu0 %1469
    %1473 = vrot.lane.b32.xlu0 %v1400, 16
    %v1474 = vpop.permute.xlu0 %1473
    %1477 = vrot.lane.b32.xlu0 %v1466, 24
    %v1478 = vpop.permute.xlu0 %1477
    %v1480 = vsel %vm185, %v1267, %v1470
    %v1481 = vsel %vm459, %v1480, %v1474
    %v1482 = vsel %vm461, %v1481, %v1478
    %v1483 = vpack.c.bf16 %v1482, %v1207
    %s1484 = scalar_lea.vmem [#allocation5], 128
    %v1485 = vld [vmem:[%s1484] sm:$0xf]
    %v1486 = vld [vmem:[%s1484 + $0x4] sm:$0xf]
    %v1487 = vld [vmem:[%s1484 + $0x8] sm:$0xf]
    %v1488 = vld [vmem:[%s1484 + $0xc] sm:$0xf]
    %s1489 = scalar_lea.vmem [#allocation7], 7
    %v1490 = vld [vmem:[%s1489] sm:$0x1]
    %v1492 = vperm.slane %v1490, 0
    %v1498 = vunpack.c.l.b16 %v1485
    %v1499 = vunpack.c.l.b16 %v1486
    %v1500 = vunpack.c.l.b16 %v1487
    %v1501 = vunpack.c.l.b16 %v1488
    %v1502 = vpack.c.b16 %v1499, %v1498
    %v1503 = vpack.c.b16 %v1501, %v1500
    %v1507 = vsel %vm91, %v1483, 0
    %1509 = vmatpush.bf16.msra.mxu0 0
    %1510 = vmatpush.bf16.msra.mxu0 0
    %1511 = vmatpush.bf16.msra.mxu0 0
    %1512 = vmatpush.bf16.msra.mxu0 0
    %1513 = vmatpush.bf16.msra.mxu0 0
    %1514 = vmatpush.bf16.msra.mxu0 0
    %1515 = vmatpush.bf16.msra.mxu0 %v1503
    %1516 = vmatpush.bf16.msra.mxu0 %v1502
    %1517 = vmatmul.bf16.gmra.mxu0 %v1507
    %v1518 = vpop.f32.mrf.mxu0
    %v1519 = vadd.f32 %v1492, %v1518
    %v1520 = vpop.f32.mrf.mxu0
    %v1521 = vadd.f32 %v1492, %v1520
    %1522 = vdwg.mxu0
    %v1523 = vadd.f32 %v1519, %v811
    %v1524 = vadd.f32 %v1521, %v813
    %v1525 = vpack.c.bf16 %v1524, %v1523
    %s1526 = scalar_lea.vmem [#allocation5], 144
    %v1527 = vld [vmem:[%s1526] sm:$0xf]
    %v1528 = vld [vmem:[%s1526 + $0x4] sm:$0xf]
    %v1529 = vld [vmem:[%s1526 + $0x8] sm:$0xf]
    %v1530 = vld [vmem:[%s1526 + $0xc] sm:$0xf]
    %v1535 = vunpack.c.l.b16 %v1527
    %v1536 = vunpack.c.l.b16 %v1528
    %v1537 = vunpack.c.l.b16 %v1529
    %v1538 = vunpack.c.l.b16 %v1530
    %v1539 = vpack.c.b16 %v1536, %v1535
    %v1540 = vpack.c.b16 %v1538, %v1537
    %v1544 = vsel %vm91, %v1525, 0
    %1546 = vmatpush.bf16.msra.mxu0 0
    %1547 = vmatpush.bf16.msra.mxu0 0
    %1548 = vmatpush.bf16.msra.mxu0 0
    %1549 = vmatpush.bf16.msra.mxu0 0
    %1550 = vmatpush.bf16.msra.mxu0 0
    %1551 = vmatpush.bf16.msra.mxu0 0
    %1552 = vmatpush.bf16.msra.mxu0 %v1540
    %1553 = vmatpush.bf16.msra.mxu0 %v1539
    %1554 = vmatmul.bf16.gmra.mxu0 %v1544
    %v1555 = vpop.f32.mrf.mxu0
    %v1556 = vadd.f32 %v1523, %v1555
    %v1557 = vpop.f32.mrf.mxu0
    %v1558 = vadd.f32 %v1524, %v1557
    %1559 = vdwg.mxu0
    %1560 = vst.msk [vmem:[#allocation8] sm:$0xff] %vm91, %v1556
    %1561 = vst.msk [vmem:[#allocation8 + $0x8] sm:$0xff] %vm91, %v1558
    // Predicated region
    $region26: #{tpu_custom_call.1} parent=1 // pred_check
      _
    $region27: #{tpu_custom_call.1} parent=1 // pred_check_branch
      %1563 = sbr.rel (0) target = $region29
    $region28: #{tpu_custom_call.1} parent=1 // pred_region
      %1565 = vsyncadd [#allocation4], 0
      %s1566 = sshll.u32 [#allocation8], 4
      %s1567 = int_to_ptr.vmem [resolvable:$true] %s1566
      %s1568 = sshll.u32 %s3, 4
      %s1569 = int_to_ptr.hbm [resolvable:$true] %s1568
      %1574 = dma.vmem_to_hbm [thread:$0]  %s1567, 256, %s1569, [#allocation4], 128, 128, 8
    $region29: #{tpu_custom_call.1} parent=1 // pred_fallthru
      _
    // Predicated region
    $region30: #{tpu_custom_call.1} parent=1 // pred_check
      _
    $region31: #{tpu_custom_call.1} parent=1 // pred_check_branch
      %1576 = sbr.rel (0) target = $region33
    $region32: #{tpu_custom_call.1} parent=1 // pred_region
      %1578 = dma.done [#allocation4], 256
    $region33: #{tpu_custom_call.1} parent=1 // pred_fallthru
      _
    %1579 = vsyncpa [#allocation3], 1
    %1580 = vsyncpa [#allocation6], 1
    %1581 = vsyncpa [#allocation4], 1

</llo_original>
